<compile_context>
chip_gen: v5e
topology: v5e:2x2
jax: 0.10.0
libtpu: 0.0.40
codegen_flags: <defaults>
</compile_context>

<pallas_src>
import jax
import jax.numpy as jnp
from jax.experimental import pallas as pl
from jax.experimental.pallas import tpu as pltpu

K_NEIGHBORS = 3  # knn_query_cuda2(3, ...)


# ---------------------------------------------------------------------------
# Fused kernel: 3-NN inverse-distance interpolation + concat + pointwise MLP
# ---------------------------------------------------------------------------
def _make_fused_kernel(num_layers, n2, c2, broadcast_recv, lane_dense):
    """One (batch, n1-tile) grid step.

    Refs (broadcast_recv == False):
      p1_ref  (1, TN1, 3) f32   | p2t_ref (1, 3, n2) f32
      f2_ref  (1, n2, c2) bf16  | f1_ref  (1, TN1, c1) bf16
      w1r_ref (c2, m0) bf16     | w1f_ref (c1, m0) bf16 | s1_ref (1, m0) f32
      [w_ref (c_in, c_out) bf16, s_ref (1, c_out) f32] * (num_layers - 1)
      out_ref (1, 1, TN1*m_last) f32 if lane_dense else (1, TN1, m_last) f32
    When broadcast_recv (n2 == 1), p1/p2t are omitted (torch `.expand` path).
    """
    # Bits needed to pack a column index into the low mantissa bits of the
    # (non-negative) squared distance: one float min-reduce then yields both
    # the (truncated) min distance and its arg-min column.
    idx_bits = max((n2 - 1).bit_length(), 0)
    idx_mask = (1 << idx_bits) - 1

    def kernel(*refs):
        if broadcast_recv:
            f2_ref, f1_ref = refs[0], refs[1]
            p = 2
        else:
            p1_ref, p2t_ref, f2_ref, f1_ref = refs[:4]
            p = 4
        w1r_ref, w1f_ref, s1_ref = refs[p], refs[p + 1], refs[p + 2]
        rest = refs[p + 3:p + 3 + 2 * (num_layers - 1)]
        out_ref = refs[p + 3 + 2 * (num_layers - 1)]

        tn1 = f1_ref.shape[1]

        if broadcast_recv:
            # n2 == 1: torch does features_2.expand(-1, n1, -1).  All rows of
            # `recv` are identical, so push the single row through layer 0 once
            # and broadcast-add the (1, m0) result (saves tn1x redundant MXU
            # work and the (tn1, c2) broadcast materialization).
            h_recv = jnp.dot(f2_ref[0], w1r_ref[...],
                             preferred_element_type=jnp.float32)      # (1, m0)
            h = jnp.dot(f1_ref[0], w1f_ref[...],
                        preferred_element_type=jnp.float32) + h_recv
        else:
            p1 = p1_ref[0]                          # (TN1, 3) f32
            p2t = p2t_ref[0]                        # (3, n2)  f32

            # Pairwise squared distances via rank-1 broadcasts (pure VPU);
            # first term initializes d (no zero-fill + extra add pass).
            # TODO(synk): knn_query_cuda2 distance convention assumed to be
            # squared euclidean (standard PointNet++ three_nn behaviour).
            d = None
            for k in range(3):
                diff = p1[:, k:k + 1] - p2t[k:k + 1, :]               # (TN1, n2)
                sq = diff * diff
                d = sq if d is None else d + sq

            col = jax.lax.broadcasted_iota(jnp.int32, (tn1, n2), 1)
            d_bits = pltpu.bitcast(d, jnp.int32)
            if idx_bits > 0:
                key_bits = ((d_bits >> idx_bits) << idx_bits) | col
            else:
                key_bits = d_bits
            # Non-negative f32 bit patterns are order-preserving, so a float
            # min over the packed key is a lexicographic (distance, col) min.
            key = pltpu.bitcast(key_bits, jnp.float32)

            # Build a sparse row-normalized weight matrix (3 nonzeros / row),
            # then one MXU matmul W @ features_2 does the gather + blend.
            w_mat = None
            w_sum = None
            for j in range(K_NEIGHBORS):
                kmin = jnp.min(key, axis=-1, keepdims=True)           # 1 XLU reduce
                kmin_bits = pltpu.bitcast(kmin, jnp.int32)
                idx = kmin_bits & idx_mask                            # argmin
                d_sel = pltpu.bitcast(kmin_bits - idx, jnp.float32)   # distance
                sel = col == idx
                w = pl.reciprocal(d_sel + 1e-8, approx=True)          # EUP slot
                contrib = jnp.where(sel, w, 0.0)
                w_mat = contrib if w_mat is None else w_mat + contrib
                w_sum = w if w_sum is None else w_sum + w
                if j + 1 < K_NEIGHBORS:
                    key = jnp.where(sel, jnp.inf, key)                # mask picked col
            w_mat = w_mat * pl.reciprocal(w_sum, approx=True)         # normalize

            recv = jnp.dot(w_mat.astype(jnp.bfloat16), f2_ref[0],
                           preferred_element_type=jnp.float32)        # (TN1, c2)

            # Layer 0, split at the concat boundary:
            #   h = recv @ W0[:c2] + features_1 @ W0[c2:]
            h = jnp.dot(recv.astype(jnp.bfloat16), w1r_ref[...],
                        preferred_element_type=jnp.float32)
            h = h + jnp.dot(f1_ref[0], w1f_ref[...],
                            preferred_element_type=jnp.float32)

        # BN scale already folded into the weights; add shift, then ReLU.
        h = jnp.maximum(h + s1_ref[...], 0.0)

        for l in range(num_layers - 1):
            w_ref, s_ref = rest[2 * l], rest[2 * l + 1]
            h = jnp.dot(h.astype(jnp.bfloat16), w_ref[...],
                        preferred_element_type=jnp.float32)
            h = jnp.maximum(h + s_ref[...], 0.0)

        if lane_dense:
            # Lane-dense store: (tn1, m_last) -> (tn1*m_last,) so the output
            # block spans full 128-lane vregs instead of masked 32-lane stores.
            out_ref[0, 0] = h.reshape(h.shape[0] * h.shape[1]).astype(out_ref.dtype)
        else:
            out_ref[0] = h.astype(out_ref.dtype)

    return kernel


# ---------------------------------------------------------------------------
# Glue: BN folding, VMEM-aware tiling, pallas_call construction
# ---------------------------------------------------------------------------
def _fold_bn(w, scale):
    """Conv1d(k=1) weight (c_out, c_in) with eval-mode BN scale folded -> (c_in, c_out)."""
    return (w * scale[:, None]).T


def _vmem_capacity_bytes():
    try:
        info = pltpu.get_tpu_info()
        for name in ("vmem_capacity_bytes", "vmem_size_bytes", "vmem_bytes"):
            cap = getattr(info, name, None)
            if cap:
                return int(cap)
    except Exception:
        pass
    return 64 * 1024 * 1024  # conservative default: v7x per-TC VMEM


def _estimate_tile_vmem_bytes(tn1, n2, c1, c2, m_dims, broadcast_recv, weight_bytes):
    """Rough per-grid-step VMEM footprint (intermediates + buffered blocks)."""
    m_last, m_max = m_dims[-1], max(m_dims)
    est = weight_bytes + n2 * c2 * 2                   # single-buffered invariants
    if not broadcast_recv:
        est += 3 * n2 * 4                              # points_2^T
        est += 6 * tn1 * n2 * 4                        # (tn1, n2) knn working set
    est += 2 * (tn1 * 3 * 4 + tn1 * c1 * 2 + tn1 * m_last * 4)  # double-buffered tiles
    est += tn1 * (c2 + 2 * m_max) * 4                  # recv + MLP temporaries
    return est


def _choose_tile_n1(n1, budget_bytes, estimate_fn, requested=None, max_target=2048):
    if requested is not None:
        if n1 % requested != 0 or (requested != n1 and requested % 8 != 0):
            raise ValueError(f"bad tile_n1={requested} for n1={n1}")
        return requested
    cands = [t for t in range(1, min(n1, max_target) + 1)
             if n1 % t == 0 and (t % 8 == 0 or t == n1)]
    if not cands:
        cands = [n1]
    for t in sorted(cands, reverse=True):              # biggest tile that fits
        if estimate_fn(t) <= budget_bytes:
            return t
    # TODO(synk): if nothing fits, chunk n2 with a running top-3 instead.
    return min(cands)


def point_feature_propagation(points_1, features_1, points_2, features_2,
                              params, *, tile_n1=None):
    """points_1 (b,n1,3), features_1 (b,n1,c1), points_2 (b,n2,3),
    features_2 (b,n2,c2); params = [(conv_w, bn_scale, bn_shift), ...].
    Returns (b, n1, mlp_units[-1]) float32 (channels-last)."""
    b, n1, _ = points_1.shape
    _, n2, c2 = features_2.shape
    c1 = features_1.shape[-1]
    num_layers = len(params)
    m_dims = [int(p[0].shape[0]) for p in params]
    m0, m_last = m_dims[0], m_dims[-1]
    broadcast_recv = (n2 == 1)

    if not broadcast_recv and n2 > (1 << 23):
        # Column index no longer fits the f32 mantissa of the packed top-3 key.
        raise ValueError("packed-key top-3 requires n2 <= 2**23")
    # TODO(synk): for near-tied distances the packed key (low mantissa bits
    # replaced by the column index) can pick a different equally-near neighbor
    # than exact knn_query_cuda2.

    # --- sizes / VMEM-aware tile selection --------------------------------
    weight_bytes = 0
    mlp_flops_per_pt = 0
    c_in = c2 + c1
    for (w, _, _) in params:
        c_out = int(w.shape[0])
        weight_bytes += c_in * c_out * 2 + c_out * 4
        mlp_flops_per_pt += 2 * c_in * c_out
        c_in = c_out

    vmem_cap = _vmem_capacity_bytes()
    vmem_limit = max(32 * 1024 * 1024, min((vmem_cap * 3) // 4, 100 * 1024 * 1024))
    budget = int(vmem_limit * 0.6)

    est_fn = lambda t: _estimate_tile_vmem_bytes(
        t, n2, c1, c2, m_dims, broadcast_recv, weight_bytes)
    tn1 = _choose_tile_n1(n1, budget, est_fn, requested=tile_n1)
    n_tiles = n1 // tn1
    grid = (b, n_tiles)

    # --- operand prep ------------------------------------------------------
    f1 = features_1.astype(jnp.bfloat16)
    f2 = features_2.astype(jnp.bfloat16)
    if not broadcast_recv:
        p1_f32 = points_1.astype(jnp.float32)
        p2t_f32 = jnp.transpose(points_2, (0, 2, 1)).astype(jnp.float32)

    # Layer 0: fold BN scale and split the weight at the concat boundary.
    w0, scale0, shift0 = params[0]
    w0t = _fold_bn(jnp.asarray(w0), jnp.asarray(scale0))              # (c2+c1, m0)
    w1r = w0t[:c2].astype(jnp.bfloat16)
    w1f = w0t[c2:].astype(jnp.bfloat16)
    s1 = jnp.asarray(shift0).reshape(1, m0).astype(jnp.float32)
    rest_params = []
    for (w, scale, shift) in params[1:]:
        c_out = int(w.shape[0])
        rest_params.append(
            (_fold_bn(jnp.asarray(w), jnp.asarray(scale)).astype(jnp.bfloat16),
             jnp.asarray(shift).reshape(1, c_out).astype(jnp.float32)))

    # --- advisory cost estimate for XLA ------------------------------------
    flops_per_pt = mlp_flops_per_pt
    transcendentals = 0
    bytes_accessed = (features_1.size * 2 + features_2.size * 2
                      + weight_bytes + b * n1 * m_last * 4)
    if not broadcast_recv:
        flops_per_pt += 9 * n2 + 2 * n2 * c2
        transcendentals = b * n1 * (K_NEIGHBORS + 1)
        bytes_accessed += points_1.size * 4 + points_2.size * 4
    cost = pl.CostEstimate(flops=int(b * n1 * flops_per_pt),
                           transcendentals=int(transcendentals),
                           bytes_accessed=int(bytes_accessed))

    def build_and_run(lane_dense, single_buffer_invariants):
        inv_mode = ({"pipeline_mode": pl.Buffered(1)}
                    if single_buffer_invariants else {})
        args, in_specs = [], []
        if not broadcast_recv:
            args += [p1_f32, p2t_f32]
            in_specs += [
                pl.BlockSpec((1, tn1, 3), lambda bi, ti: (bi, ti, 0)),
                pl.BlockSpec((1, 3, n2), lambda bi, ti: (bi, 0, 0), **inv_mode),
            ]
        args += [f2, f1]
        in_specs += [
            pl.BlockSpec((1, n2, c2), lambda bi, ti: (bi, 0, 0), **inv_mode),
            pl.BlockSpec((1, tn1, c1), lambda bi, ti: (bi, ti, 0)),
        ]
        args += [w1r, w1f, s1]
        in_specs += [
            pl.BlockSpec((c2, m0), lambda bi, ti: (0, 0), **inv_mode),
            pl.BlockSpec((c1, m0), lambda bi, ti: (0, 0), **inv_mode),
            pl.BlockSpec((1, m0), lambda bi, ti: (0, 0), **inv_mode),
        ]
        for (w_l, s_l) in rest_params:
            c_in_l, c_out_l = int(w_l.shape[0]), int(w_l.shape[1])
            args += [w_l, s_l]
            in_specs += [
                pl.BlockSpec((c_in_l, c_out_l), lambda bi, ti: (0, 0), **inv_mode),
                pl.BlockSpec((1, c_out_l), lambda bi, ti: (0, 0), **inv_mode),
            ]

        if lane_dense:
            out_shape = jax.ShapeDtypeStruct((b, n_tiles, tn1 * m_last), jnp.float32)
            out_spec = pl.BlockSpec((1, 1, tn1 * m_last), lambda bi, ti: (bi, ti, 0))
        else:
            out_shape = jax.ShapeDtypeStruct((b, n1, m_last), jnp.float32)
            out_spec = pl.BlockSpec((1, tn1, m_last), lambda bi, ti: (bi, ti, 0))

        out = pl.pallas_call(
            _make_fused_kernel(num_layers, n2, c2, broadcast_recv, lane_dense),
            out_shape=out_shape,
            grid=grid,
            in_specs=in_specs,
            out_specs=out_spec,
            compiler_params=pltpu.CompilerParams(
                dimension_semantics=("parallel", "parallel"),
                vmem_limit_bytes=int(vmem_limit)),
            cost_estimate=cost,
        )(*args)
        out = jax.block_until_ready(out)
        if lane_dense:
            # (b, n_tiles, tn1*m_last) -> (b, n1, m_last): row-major compatible,
            # so this reshape is layout-free.
            out = out.reshape(b, n1, m_last)
        return out

    # Preferred config first; degrade gracefully if this JAX build rejects the
    # lane-dense in-kernel reshape or single-buffered pipeline_mode.
    ld_ok = (tn1 * m_last) % 128 == 0
    configs = ([(True, True), (True, False)] if ld_ok else []) + \
              [(False, True), (False, False)]
    last_err = None
    for cfg in configs:
        try:
            return build_and_run(*cfg)
        except Exception as e:  # fall back to the next (more conservative) config
            last_err = e
    raise last_err


# ---------------------------------------------------------------------------
# Params (Conv1d k=1 no-bias + folded eval-mode BatchNorm1d)
# ---------------------------------------------------------------------------
def init_params(key, in_channels, mlp_units):
    # TODO(synk): PyTorch module defaults to training-mode BN (batch stats);
    # here BN uses deterministic running stats folded into scale/shift.
    params = []
    c_in = in_channels
    eps = 1e-5
    for c_out in mlp_units:
        key, kw, kg, kb, km, kv = jax.random.split(key, 6)
        w = jax.random.normal(kw, (c_out, c_in), jnp.float32) / jnp.sqrt(c_in)
        gamma = 1.0 + 0.1 * jax.random.normal(kg, (c_out,), jnp.float32)
        beta = 0.1 * jax.random.normal(kb, (c_out,), jnp.float32)
        r_mean = 0.1 * jax.random.normal(km, (c_out,), jnp.float32)
        r_var = jnp.abs(1.0 + 0.1 * jax.random.normal(kv, (c_out,), jnp.float32))
        scale = gamma / jnp.sqrt(r_var + eps)
        shift = beta - r_mean * scale
        params.append((w, scale, shift))
        c_in = c_out
    return params


# ---------------------------------------------------------------------------
# Pure-JAX (f32) reference for validation
# ---------------------------------------------------------------------------
def ref_forward(points_1, features_1, points_2, features_2, params):
    b, n1, _ = points_1.shape
    n2 = points_2.shape[1]
    if n2 == 1:
        recv = jnp.broadcast_to(features_2, (b, n1, features_2.shape[-1]))
    else:
        d = jnp.sum((points_1[:, :, None, :] - points_2[:, None, :, :]) ** 2, axis=-1)
        neg_d, idx = jax.lax.top_k(-d, K_NEIGHBORS)
        dist = -neg_d
        recip = 1.0 / (dist + 1e-8)
        w = recip / jnp.sum(recip, axis=-1, keepdims=True)
        gathered = jax.vmap(lambda f, i: f[i])(features_2, idx)   # (b, n1, 3, c2)
        recv = jnp.sum(w[..., None] * gathered, axis=2)
    h = jnp.concatenate([recv, features_1], axis=-1)
    for (wgt, scale, shift) in params:
        h = jnp.maximum((h @ wgt.T) * scale + shift, 0.0)
    return h


if __name__ == "__main__":
    key = jax.random.PRNGKey(0)
    b, n1, n2, c1, c2 = 2, 128, 16, 16, 32
    mlp_units = (64, 32)
    in_channels = c1 + c2

    k1, k2, k3, k4, kp = jax.random.split(key, 5)
    points_1 = jax.random.normal(k1, (b, n1, 3), jnp.float32)
    points_2 = jax.random.normal(k2, (b, n2, 3), jnp.float32)
    features_1 = jax.random.normal(k3, (b, n1, c1), jnp.float32)
    features_2 = jax.random.normal(k4, (b, n2, c2), jnp.float32)
    params = init_params(kp, in_channels, mlp_units)

    ref = ref_forward(points_1, features_1, points_2, features_2, params)

    # Main path with explicit tile (grid (2, 2): exercises both grid axes).
    out = point_feature_propagation(points_1, features_1, points_2, features_2,
                                    params, tile_n1=64)
    out = jax.block_until_ready(out)
    assert out.shape == (b, n1, mlp_units[-1]), out.shape
    err = float(jnp.max(jnp.abs(out - ref)))
    # bf16 MXU inputs + approx reciprocals vs. pure-f32 reference.
    assert jnp.allclose(out, ref, atol=5e-2, rtol=5e-2), f"max abs err {err}"

    # VMEM-aware automatic tile selection path.
    out_auto = point_feature_propagation(points_1, features_1, points_2,
                                         features_2, params)
    out_auto = jax.block_until_ready(out_auto)
    err_a = float(jnp.max(jnp.abs(out_auto - ref)))
    assert jnp.allclose(out_auto, ref, atol=5e-2, rtol=5e-2), f"max abs err {err_a}"

    # n2 == 1 broadcast path.
    p2_one = jax.random.normal(k2, (b, 1, 3), jnp.float32)
    f2_one = jax.random.normal(k4, (b, 1, c2), jnp.float32)
    out1 = point_feature_propagation(points_1, features_1, p2_one, f2_one,
                                     params, tile_n1=64)
    out1 = jax.block_until_ready(out1)
    ref1 = ref_forward(points_1, features_1, p2_one, f2_one, params)
    err1 = float(jnp.max(jnp.abs(out1 - ref1)))
    assert jnp.allclose(out1, ref1, atol=5e-2, rtol=5e-2), f"max abs err {err1}"

    print("KERNEL_OK")
</pallas_src>

<mosaic_0001>
module attributes {stable_mosaic.version = 11 : i64} {
  func.func @kernel(%arg0: i32, %arg1: i32, %arg2: memref<1x64x3xf32, #tpu.memory_space<vmem>>, %arg3: memref<1x3x16xf32, #tpu.memory_space<vmem>>, %arg4: memref<1x16x32xbf16, #tpu.memory_space<vmem>>, %arg5: memref<1x64x16xbf16, #tpu.memory_space<vmem>>, %arg6: memref<32x64xbf16, #tpu.memory_space<vmem>>, %arg7: memref<16x64xbf16, #tpu.memory_space<vmem>>, %arg8: memref<1x64xf32, #tpu.memory_space<vmem>>, %arg9: memref<64x32xbf16, #tpu.memory_space<vmem>>, %arg10: memref<1x32xf32, #tpu.memory_space<vmem>>, %arg11: memref<1x64x32xf32, #tpu.memory_space<vmem>>) attributes {dimension_semantics = [#tpu.dimension_semantics<parallel>, #tpu.dimension_semantics<parallel>], iteration_bounds = array<i64: 2, 2>, scalar_prefetch = 0 : i64, scratch_operands = 0 : i64, tpu.core_type = #tpu.core_type<tc>, window_params = [{transform_indices = @transform_0, window_bounds = array<i64: 1, 64, 3>}, {pipeline_mode = #tpu.pipeline_mode<synchronous>, transform_indices = @transform_1, window_bounds = array<i64: 1, 3, 16>}, {pipeline_mode = #tpu.pipeline_mode<synchronous>, transform_indices = @transform_2, window_bounds = array<i64: 1, 16, 32>}, {transform_indices = @transform_3, window_bounds = array<i64: 1, 64, 16>}, {pipeline_mode = #tpu.pipeline_mode<synchronous>, transform_indices = @transform_4, window_bounds = array<i64: 32, 64>}, {pipeline_mode = #tpu.pipeline_mode<synchronous>, transform_indices = @transform_5, window_bounds = array<i64: 16, 64>}, {pipeline_mode = #tpu.pipeline_mode<synchronous>, transform_indices = @transform_6, window_bounds = array<i64: 1, 64>}, {pipeline_mode = #tpu.pipeline_mode<synchronous>, transform_indices = @transform_7, window_bounds = array<i64: 64, 32>}, {pipeline_mode = #tpu.pipeline_mode<synchronous>, transform_indices = @transform_8, window_bounds = array<i64: 1, 32>}, {transform_indices = @transform_9, window_bounds = array<i64: 1, 64, 32>}]} {
    %c0 = arith.constant 0 : index
    %c0_0 = arith.constant 0 : index
    %c0_1 = arith.constant 0 : index
    %0 = vector.load %arg2[%c0, %c0_0, %c0_1] : memref<1x64x3xf32, #tpu.memory_space<vmem>>, vector<1x64x3xf32>
    %1 = vector.shape_cast %0 : vector<1x64x3xf32> to vector<64x3xf32>
    %c0_2 = arith.constant 0 : index
    %c0_3 = arith.constant 0 : index
    %c0_4 = arith.constant 0 : index
    %2 = vector.load %arg3[%c0_2, %c0_3, %c0_4] : memref<1x3x16xf32, #tpu.memory_space<vmem>>, vector<1x3x16xf32>
    %3 = vector.shape_cast %2 : vector<1x3x16xf32> to vector<3x16xf32>
    %4 = vector.extract_strided_slice %1 {offsets = [0, 0], sizes = [64, 1], strides = [1, 1]} : vector<64x3xf32> to vector<64x1xf32>
    %5 = vector.extract_strided_slice %3 {offsets = [0, 0], sizes = [1, 16], strides = [1, 1]} : vector<3x16xf32> to vector<1x16xf32>
    %6 = vector.broadcast %4 : vector<64x1xf32> to vector<64x16xf32>
    %7 = vector.broadcast %5 : vector<1x16xf32> to vector<64x16xf32>
    %8 = arith.subf %6, %7 : vector<64x16xf32>
    %9 = arith.mulf %8, %8 : vector<64x16xf32>
    %10 = vector.extract_strided_slice %1 {offsets = [0, 1], sizes = [64, 1], strides = [1, 1]} : vector<64x3xf32> to vector<64x1xf32>
    %11 = vector.extract_strided_slice %3 {offsets = [1, 0], sizes = [1, 16], strides = [1, 1]} : vector<3x16xf32> to vector<1x16xf32>
    %12 = vector.broadcast %10 : vector<64x1xf32> to vector<64x16xf32>
    %13 = vector.broadcast %11 : vector<1x16xf32> to vector<64x16xf32>
    %14 = arith.subf %12, %13 : vector<64x16xf32>
    %15 = arith.mulf %14, %14 : vector<64x16xf32>
    %16 = arith.addf %9, %15 : vector<64x16xf32>
    %17 = vector.extract_strided_slice %1 {offsets = [0, 2], sizes = [64, 1], strides = [1, 1]} : vector<64x3xf32> to vector<64x1xf32>
    %18 = vector.extract_strided_slice %3 {offsets = [2, 0], sizes = [1, 16], strides = [1, 1]} : vector<3x16xf32> to vector<1x16xf32>
    %19 = vector.broadcast %17 : vector<64x1xf32> to vector<64x16xf32>
    %20 = vector.broadcast %18 : vector<1x16xf32> to vector<64x16xf32>
    %21 = arith.subf %19, %20 : vector<64x16xf32>
    %22 = arith.mulf %21, %21 : vector<64x16xf32>
    %23 = arith.addf %16, %22 : vector<64x16xf32>
    %24 = tpu.iota {dimensions = array<i32: 1>} : vector<64x16xi32>
    %25 = tpu.bitcast %23 : vector<64x16xf32> -> vector<64x16xi32>
    %c4_i32 = arith.constant 4 : i32
    %26 = vector.broadcast %c4_i32 : i32 to vector<64x16xi32>
    %27 = arith.shrsi %25, %26 : vector<64x16xi32>
    %c4_i32_5 = arith.constant 4 : i32
    %28 = vector.broadcast %c4_i32_5 : i32 to vector<64x16xi32>
    %29 = arith.shli %27, %28 : vector<64x16xi32>
    %30 = arith.ori %29, %24 : vector<64x16xi32>
    %31 = tpu.bitcast %30 : vector<64x16xi32> -> vector<64x16xf32>
    %cst = arith.constant dense<0x7F800000> : vector<64xf32>
    %32 = vector.multi_reduction <minimumf>, %31, %cst [1] : vector<64x16xf32> to vector<64xf32>
    %33 = vector.shape_cast %32 : vector<64xf32> to vector<64x1xf32>
    %34 = tpu.bitcast %33 : vector<64x1xf32> -> vector<64x1xi32>
    %c15_i32 = arith.constant 15 : i32
    %35 = vector.broadcast %c15_i32 : i32 to vector<64x1xi32>
    %36 = arith.andi %34, %35 : vector<64x1xi32>
    %37 = arith.subi %34, %36 : vector<64x1xi32>
    %38 = tpu.bitcast %37 : vector<64x1xi32> -> vector<64x1xf32>
    %39 = vector.broadcast %36 : vector<64x1xi32> to vector<64x16xi32>
    %40 = arith.cmpi eq, %24, %39 : vector<64x16xi32>
    %cst_6 = arith.constant 9.99999993E-9 : f32
    %41 = vector.broadcast %cst_6 : f32 to vector<64x1xf32>
    %42 = arith.addf %38, %41 : vector<64x1xf32>
    %43 = tpu.reciprocal %42 {approx = true} : vector<64x1xf32> -> vector<64x1xf32>
    %cst_7 = arith.constant 0.000000e+00 : f32
    %44 = vector.shape_cast %43 : vector<64x1xf32> to vector<64x1xf32>
    %45 = vector.broadcast %44 : vector<64x1xf32> to vector<64x16xf32>
    %46 = vector.broadcast %cst_7 : f32 to vector<64x16xf32>
    %47 = arith.select %40, %45, %46 : vector<64x16xi1>, vector<64x16xf32>
    %cst_8 = arith.constant 0x7F800000 : f32
    %48 = vector.broadcast %cst_8 : f32 to vector<64x16xf32>
    %49 = arith.select %40, %48, %31 : vector<64x16xi1>, vector<64x16xf32>
    %cst_9 = arith.constant dense<0x7F800000> : vector<64xf32>
    %50 = vector.multi_reduction <minimumf>, %49, %cst_9 [1] : vector<64x16xf32> to vector<64xf32>
    %51 = vector.shape_cast %50 : vector<64xf32> to vector<64x1xf32>
    %52 = tpu.bitcast %51 : vector<64x1xf32> -> vector<64x1xi32>
    %c15_i32_10 = arith.constant 15 : i32
    %53 = vector.broadcast %c15_i32_10 : i32 to vector<64x1xi32>
    %54 = arith.andi %52, %53 : vector<64x1xi32>
    %55 = arith.subi %52, %54 : vector<64x1xi32>
    %56 = tpu.bitcast %55 : vector<64x1xi32> -> vector<64x1xf32>
    %57 = vector.broadcast %54 : vector<64x1xi32> to vector<64x16xi32>
    %58 = arith.cmpi eq, %24, %57 : vector<64x16xi32>
    %cst_11 = arith.constant 9.99999993E-9 : f32
    %59 = vector.broadcast %cst_11 : f32 to vector<64x1xf32>
    %60 = arith.addf %56, %59 : vector<64x1xf32>
    %61 = tpu.reciprocal %60 {approx = true} : vector<64x1xf32> -> vector<64x1xf32>
    %cst_12 = arith.constant 0.000000e+00 : f32
    %62 = vector.shape_cast %61 : vector<64x1xf32> to vector<64x1xf32>
    %63 = vector.broadcast %62 : vector<64x1xf32> to vector<64x16xf32>
    %64 = vector.broadcast %cst_12 : f32 to vector<64x16xf32>
    %65 = arith.select %58, %63, %64 : vector<64x16xi1>, vector<64x16xf32>
    %66 = arith.addf %47, %65 : vector<64x16xf32>
    %67 = arith.addf %43, %61 : vector<64x1xf32>
    %cst_13 = arith.constant 0x7F800000 : f32
    %68 = vector.broadcast %cst_13 : f32 to vector<64x16xf32>
    %69 = arith.select %58, %68, %49 : vector<64x16xi1>, vector<64x16xf32>
    %cst_14 = arith.constant dense<0x7F800000> : vector<64xf32>
    %70 = vector.multi_reduction <minimumf>, %69, %cst_14 [1] : vector<64x16xf32> to vector<64xf32>
    %71 = vector.shape_cast %70 : vector<64xf32> to vector<64x1xf32>
    %72 = tpu.bitcast %71 : vector<64x1xf32> -> vector<64x1xi32>
    %c15_i32_15 = arith.constant 15 : i32
    %73 = vector.broadcast %c15_i32_15 : i32 to vector<64x1xi32>
    %74 = arith.andi %72, %73 : vector<64x1xi32>
    %75 = arith.subi %72, %74 : vector<64x1xi32>
    %76 = tpu.bitcast %75 : vector<64x1xi32> -> vector<64x1xf32>
    %77 = vector.broadcast %74 : vector<64x1xi32> to vector<64x16xi32>
    %78 = arith.cmpi eq, %24, %77 : vector<64x16xi32>
    %cst_16 = arith.constant 9.99999993E-9 : f32
    %79 = vector.broadcast %cst_16 : f32 to vector<64x1xf32>
    %80 = arith.addf %76, %79 : vector<64x1xf32>
    %81 = tpu.reciprocal %80 {approx = true} : vector<64x1xf32> -> vector<64x1xf32>
    %cst_17 = arith.constant 0.000000e+00 : f32
    %82 = vector.shape_cast %81 : vector<64x1xf32> to vector<64x1xf32>
    %83 = vector.broadcast %82 : vector<64x1xf32> to vector<64x16xf32>
    %84 = vector.broadcast %cst_17 : f32 to vector<64x16xf32>
    %85 = arith.select %78, %83, %84 : vector<64x16xi1>, vector<64x16xf32>
    %86 = arith.addf %66, %85 : vector<64x16xf32>
    %87 = arith.addf %67, %81 : vector<64x1xf32>
    %88 = tpu.reciprocal %87 {approx = true} : vector<64x1xf32> -> vector<64x1xf32>
    %89 = vector.broadcast %88 : vector<64x1xf32> to vector<64x16xf32>
    %90 = arith.mulf %86, %89 : vector<64x16xf32>
    %91 = arith.truncf %90 : vector<64x16xf32> to vector<64x16xbf16>
    %c0_18 = arith.constant 0 : index
    %c0_19 = arith.constant 0 : index
    %c0_20 = arith.constant 0 : index
    %92 = vector.load %arg4[%c0_18, %c0_19, %c0_20] : memref<1x16x32xbf16, #tpu.memory_space<vmem>>, vector<1x16x32xbf16>
    %93 = vector.shape_cast %92 : vector<1x16x32xbf16> to vector<16x32xbf16>
    %cst_21 = arith.constant dense<0.000000e+00> : vector<64x32xf32>
    %94 = tpu.matmul %91, %93, %cst_21 {dimension_numbers = #tpu.dot_dimension_numbers<[1], [0], [0], [1], [0, 0, 1, 1], [], []>} : vector<64x16xbf16>, vector<16x32xbf16>, vector<64x32xf32> -> vector<64x32xf32>
    %95 = arith.truncf %94 : vector<64x32xf32> to vector<64x32xbf16>
    %c0_22 = arith.constant 0 : index
    %c0_23 = arith.constant 0 : index
    %96 = vector.load %arg6[%c0_22, %c0_23] : memref<32x64xbf16, #tpu.memory_space<vmem>>, vector<32x64xbf16>
    %cst_24 = arith.constant dense<0.000000e+00> : vector<64x64xf32>
    %97 = tpu.matmul %95, %96, %cst_24 {dimension_numbers = #tpu.dot_dimension_numbers<[1], [0], [0], [1], [0, 0, 1, 1], [], []>} : vector<64x32xbf16>, vector<32x64xbf16>, vector<64x64xf32> -> vector<64x64xf32>
    %c0_25 = arith.constant 0 : index
    %c0_26 = arith.constant 0 : index
    %c0_27 = arith.constant 0 : index
    %98 = vector.load %arg5[%c0_25, %c0_26, %c0_27] : memref<1x64x16xbf16, #tpu.memory_space<vmem>>, vector<1x64x16xbf16>
    %99 = vector.shape_cast %98 : vector<1x64x16xbf16> to vector<64x16xbf16>
    %c0_28 = arith.constant 0 : index
    %c0_29 = arith.constant 0 : index
    %100 = vector.load %arg7[%c0_28, %c0_29] : memref<16x64xbf16, #tpu.memory_space<vmem>>, vector<16x64xbf16>
    %cst_30 = arith.constant dense<0.000000e+00> : vector<64x64xf32>
    %101 = tpu.matmul %99, %100, %cst_30 {dimension_numbers = #tpu.dot_dimension_numbers<[1], [0], [0], [1], [0, 0, 1, 1], [], []>} : vector<64x16xbf16>, vector<16x64xbf16>, vector<64x64xf32> -> vector<64x64xf32>
    %102 = arith.addf %97, %101 : vector<64x64xf32>
    %c0_31 = arith.constant 0 : index
    %c0_32 = arith.constant 0 : index
    %103 = vector.load %arg8[%c0_31, %c0_32] : memref<1x64xf32, #tpu.memory_space<vmem>>, vector<1x64xf32>
    %104 = vector.broadcast %103 : vector<1x64xf32> to vector<64x64xf32>
    %105 = arith.addf %102, %104 : vector<64x64xf32>
    %cst_33 = arith.constant 0.000000e+00 : f32
    %106 = vector.broadcast %cst_33 : f32 to vector<64x64xf32>
    %107 = arith.maximumf %105, %106 : vector<64x64xf32>
    %108 = arith.truncf %107 : vector<64x64xf32> to vector<64x64xbf16>
    %c0_34 = arith.constant 0 : index
    %c0_35 = arith.constant 0 : index
    %109 = vector.load %arg9[%c0_34, %c0_35] : memref<64x32xbf16, #tpu.memory_space<vmem>>, vector<64x32xbf16>
    %cst_36 = arith.constant dense<0.000000e+00> : vector<64x32xf32>
    %110 = tpu.matmul %108, %109, %cst_36 {dimension_numbers = #tpu.dot_dimension_numbers<[1], [0], [0], [1], [0, 0, 1, 1], [], []>} : vector<64x64xbf16>, vector<64x32xbf16>, vector<64x32xf32> -> vector<64x32xf32>
    %c0_37 = arith.constant 0 : index
    %c0_38 = arith.constant 0 : index
    %111 = vector.load %arg10[%c0_37, %c0_38] : memref<1x32xf32, #tpu.memory_space<vmem>>, vector<1x32xf32>
    %112 = vector.broadcast %111 : vector<1x32xf32> to vector<64x32xf32>
    %113 = arith.addf %110, %112 : vector<64x32xf32>
    %cst_39 = arith.constant 0.000000e+00 : f32
    %114 = vector.broadcast %cst_39 : f32 to vector<64x32xf32>
    %115 = arith.maximumf %113, %114 : vector<64x32xf32>
    %c0_40 = arith.constant 0 : index
    %c0_41 = arith.constant 0 : index
    %c0_42 = arith.constant 0 : index
    %116 = vector.load %arg11[%c0_40, %c0_41, %c0_42] : memref<1x64x32xf32, #tpu.memory_space<vmem>>, vector<1x64x32xf32>
    %117 = vector.shape_cast %116 : vector<1x64x32xf32> to vector<64x32xf32>
    %118 = vector.shape_cast %115 : vector<64x32xf32> to vector<1x64x32xf32>
    tpu.vector_store %arg11[%c0_40, %c0_41, %c0_42], %118 {strides = array<i32>} : memref<1x64x32xf32, #tpu.memory_space<vmem>>, vector<1x64x32xf32>,
    return
  }
  func.func @transform_0(%arg0: i32, %arg1: i32) -> (i32, i32, i32) {
    %c0_i32 = arith.constant 0 : i32
    %c0_i32_0 = arith.constant 0 : i32
    return %arg0, %arg1, %c0_i32 : i32, i32, i32
  }
  func.func @transform_1(%arg0: i32, %arg1: i32) -> (i32, i32, i32) {
    %c0_i32 = arith.constant 0 : i32
    %c0_i32_0 = arith.constant 0 : i32
    %c0_i32_1 = arith.constant 0 : i32
    return %arg0, %c0_i32, %c0_i32_0 : i32, i32, i32
  }
  func.func @transform_2(%arg0: i32, %arg1: i32) -> (i32, i32, i32) {
    %c0_i32 = arith.constant 0 : i32
    %c0_i32_0 = arith.constant 0 : i32
    %c0_i32_1 = arith.constant 0 : i32
    return %arg0, %c0_i32, %c0_i32_0 : i32, i32, i32
  }
  func.func @transform_3(%arg0: i32, %arg1: i32) -> (i32, i32, i32) {
    %c0_i32 = arith.constant 0 : i32
    %c0_i32_0 = arith.constant 0 : i32
    return %arg0, %arg1, %c0_i32 : i32, i32, i32
  }
  func.func @transform_4(%arg0: i32, %arg1: i32) -> (i32, i32) {
    %c0_i32 = arith.constant 0 : i32
    %c0_i32_0 = arith.constant 0 : i32
    %c0_i32_1 = arith.constant 0 : i32
    return %c0_i32, %c0_i32_0 : i32, i32
  }
  func.func @transform_5(%arg0: i32, %arg1: i32) -> (i32, i32) {
    %c0_i32 = arith.constant 0 : i32
    %c0_i32_0 = arith.constant 0 : i32
    %c0_i32_1 = arith.constant 0 : i32
    return %c0_i32, %c0_i32_0 : i32, i32
  }
  func.func @transform_6(%arg0: i32, %arg1: i32) -> (i32, i32) {
    %c0_i32 = arith.constant 0 : i32
    %c0_i32_0 = arith.constant 0 : i32
    %c0_i32_1 = arith.constant 0 : i32
    return %c0_i32, %c0_i32_0 : i32, i32
  }
  func.func @transform_7(%arg0: i32, %arg1: i32) -> (i32, i32) {
    %c0_i32 = arith.constant 0 : i32
    %c0_i32_0 = arith.constant 0 : i32
    %c0_i32_1 = arith.constant 0 : i32
    return %c0_i32, %c0_i32_0 : i32, i32
  }
  func.func @transform_8(%arg0: i32, %arg1: i32) -> (i32, i32) {
    %c0_i32 = arith.constant 0 : i32
    %c0_i32_0 = arith.constant 0 : i32
    %c0_i32_1 = arith.constant 0 : i32
    return %c0_i32, %c0_i32_0 : i32, i32
  }
  func.func @transform_9(%arg0: i32, %arg1: i32) -> (i32, i32, i32) {
    %c0_i32 = arith.constant 0 : i32
    %c0_i32_0 = arith.constant 0 : i32
    return %arg0, %arg1, %c0_i32 : i32, i32, i32
  }
}

module attributes {stable_mosaic.version = 11 : i64} {
  func.func @kernel(%arg0: i32, %arg1: i32, %arg2: memref<1x64x3xf32, #tpu.memory_space<vmem>>, %arg3: memref<1x3x16xf32, #tpu.memory_space<vmem>>, %arg4: memref<1x16x32xbf16, #tpu.memory_space<vmem>>, %arg5: memref<1x64x16xbf16, #tpu.memory_space<vmem>>, %arg6: memref<32x64xbf16, #tpu.memory_space<vmem>>, %arg7: memref<16x64xbf16, #tpu.memory_space<vmem>>, %arg8: memref<1x64xf32, #tpu.memory_space<vmem>>, %arg9: memref<64x32xbf16, #tpu.memory_space<vmem>>, %arg10: memref<1x32xf32, #tpu.memory_space<vmem>>, %arg11: memref<1x64x32xf32, #tpu.memory_space<vmem>>) attributes {dimension_semantics = [#tpu.dimension_semantics<parallel>, #tpu.dimension_semantics<parallel>], iteration_bounds = array<i64: 2, 2>, scalar_prefetch = 0 : i64, scratch_operands = 0 : i64, tpu.core_type = #tpu.core_type<tc>, window_params = [{transform_indices = @transform_0, window_bounds = array<i64: 1, 64, 3>}, {transform_indices = @transform_1, window_bounds = array<i64: 1, 3, 16>}, {transform_indices = @transform_2, window_bounds = array<i64: 1, 16, 32>}, {transform_indices = @transform_3, window_bounds = array<i64: 1, 64, 16>}, {pipeline_mode = #tpu.pipeline_mode<synchronous>, transform_indices = @transform_4, window_bounds = array<i64: 32, 64>}, {pipeline_mode = #tpu.pipeline_mode<synchronous>, transform_indices = @transform_5, window_bounds = array<i64: 16, 64>}, {pipeline_mode = #tpu.pipeline_mode<synchronous>, transform_indices = @transform_6, window_bounds = array<i64: 1, 64>}, {pipeline_mode = #tpu.pipeline_mode<synchronous>, transform_indices = @transform_7, window_bounds = array<i64: 64, 32>}, {pipeline_mode = #tpu.pipeline_mode<synchronous>, transform_indices = @transform_8, window_bounds = array<i64: 1, 32>}, {transform_indices = @transform_9, window_bounds = array<i64: 1, 64, 32>}]} {
    %c0 = arith.constant 0 : index
    %c0_0 = arith.constant 0 : index
    %c0_1 = arith.constant 0 : index
    %0 = vector.load %arg2[%c0, %c0_0, %c0_1] : memref<1x64x3xf32, #tpu.memory_space<vmem>>, vector<1x64x3xf32>
    %1 = vector.shape_cast %0 : vector<1x64x3xf32> to vector<64x3xf32>
    %c0_2 = arith.constant 0 : index
    %c0_3 = arith.constant 0 : index
    %c0_4 = arith.constant 0 : index
    %2 = vector.load %arg3[%c0_2, %c0_3, %c0_4] : memref<1x3x16xf32, #tpu.memory_space<vmem>>, vector<1x3x16xf32>
    %3 = vector.shape_cast %2 : vector<1x3x16xf32> to vector<3x16xf32>
    %4 = vector.extract_strided_slice %1 {offsets = [0, 0], sizes = [64, 1], strides = [1, 1]} : vector<64x3xf32> to vector<64x1xf32>
    %5 = vector.extract_strided_slice %3 {offsets = [0, 0], sizes = [1, 16], strides = [1, 1]} : vector<3x16xf32> to vector<1x16xf32>
    %6 = vector.broadcast %4 : vector<64x1xf32> to vector<64x16xf32>
    %7 = vector.broadcast %5 : vector<1x16xf32> to vector<64x16xf32>
    %8 = arith.subf %6, %7 : vector<64x16xf32>
    %9 = arith.mulf %8, %8 : vector<64x16xf32>
    %10 = vector.extract_strided_slice %1 {offsets = [0, 1], sizes = [64, 1], strides = [1, 1]} : vector<64x3xf32> to vector<64x1xf32>
    %11 = vector.extract_strided_slice %3 {offsets = [1, 0], sizes = [1, 16], strides = [1, 1]} : vector<3x16xf32> to vector<1x16xf32>
    %12 = vector.broadcast %10 : vector<64x1xf32> to vector<64x16xf32>
    %13 = vector.broadcast %11 : vector<1x16xf32> to vector<64x16xf32>
    %14 = arith.subf %12, %13 : vector<64x16xf32>
    %15 = arith.mulf %14, %14 : vector<64x16xf32>
    %16 = arith.addf %9, %15 : vector<64x16xf32>
    %17 = vector.extract_strided_slice %1 {offsets = [0, 2], sizes = [64, 1], strides = [1, 1]} : vector<64x3xf32> to vector<64x1xf32>
    %18 = vector.extract_strided_slice %3 {offsets = [2, 0], sizes = [1, 16], strides = [1, 1]} : vector<3x16xf32> to vector<1x16xf32>
    %19 = vector.broadcast %17 : vector<64x1xf32> to vector<64x16xf32>
    %20 = vector.broadcast %18 : vector<1x16xf32> to vector<64x16xf32>
    %21 = arith.subf %19, %20 : vector<64x16xf32>
    %22 = arith.mulf %21, %21 : vector<64x16xf32>
    %23 = arith.addf %16, %22 : vector<64x16xf32>
    %24 = tpu.iota {dimensions = array<i32: 1>} : vector<64x16xi32>
    %25 = tpu.bitcast %23 : vector<64x16xf32> -> vector<64x16xi32>
    %c4_i32 = arith.constant 4 : i32
    %26 = vector.broadcast %c4_i32 : i32 to vector<64x16xi32>
    %27 = arith.shrsi %25, %26 : vector<64x16xi32>
    %c4_i32_5 = arith.constant 4 : i32
    %28 = vector.broadcast %c4_i32_5 : i32 to vector<64x16xi32>
    %29 = arith.shli %27, %28 : vector<64x16xi32>
    %30 = arith.ori %29, %24 : vector<64x16xi32>
    %31 = tpu.bitcast %30 : vector<64x16xi32> -> vector<64x16xf32>
    %cst = arith.constant dense<0x7F800000> : vector<64xf32>
    %32 = vector.multi_reduction <minimumf>, %31, %cst [1] : vector<64x16xf32> to vector<64xf32>
    %33 = vector.shape_cast %32 : vector<64xf32> to vector<64x1xf32>
    %34 = tpu.bitcast %33 : vector<64x1xf32> -> vector<64x1xi32>
    %c15_i32 = arith.constant 15 : i32
    %35 = vector.broadcast %c15_i32 : i32 to vector<64x1xi32>
    %36 = arith.andi %34, %35 : vector<64x1xi32>
    %37 = arith.subi %34, %36 : vector<64x1xi32>
    %38 = tpu.bitcast %37 : vector<64x1xi32> -> vector<64x1xf32>
    %39 = vector.broadcast %36 : vector<64x1xi32> to vector<64x16xi32>
    %40 = arith.cmpi eq, %24, %39 : vector<64x16xi32>
    %cst_6 = arith.constant 9.99999993E-9 : f32
    %41 = vector.broadcast %cst_6 : f32 to vector<64x1xf32>
    %42 = arith.addf %38, %41 : vector<64x1xf32>
    %43 = tpu.reciprocal %42 {approx = true} : vector<64x1xf32> -> vector<64x1xf32>
    %cst_7 = arith.constant 0.000000e+00 : f32
    %44 = vector.shape_cast %43 : vector<64x1xf32> to vector<64x1xf32>
    %45 = vector.broadcast %44 : vector<64x1xf32> to vector<64x16xf32>
    %46 = vector.broadcast %cst_7 : f32 to vector<64x16xf32>
    %47 = arith.select %40, %45, %46 : vector<64x16xi1>, vector<64x16xf32>
    %cst_8 = arith.constant 0x7F800000 : f32
    %48 = vector.broadcast %cst_8 : f32 to vector<64x16xf32>
    %49 = arith.select %40, %48, %31 : vector<64x16xi1>, vector<64x16xf32>
    %cst_9 = arith.constant dense<0x7F800000> : vector<64xf32>
    %50 = vector.multi_reduction <minimumf>, %49, %cst_9 [1] : vector<64x16xf32> to vector<64xf32>
    %51 = vector.shape_cast %50 : vector<64xf32> to vector<64x1xf32>
    %52 = tpu.bitcast %51 : vector<64x1xf32> -> vector<64x1xi32>
    %c15_i32_10 = arith.constant 15 : i32
    %53 = vector.broadcast %c15_i32_10 : i32 to vector<64x1xi32>
    %54 = arith.andi %52, %53 : vector<64x1xi32>
    %55 = arith.subi %52, %54 : vector<64x1xi32>
    %56 = tpu.bitcast %55 : vector<64x1xi32> -> vector<64x1xf32>
    %57 = vector.broadcast %54 : vector<64x1xi32> to vector<64x16xi32>
    %58 = arith.cmpi eq, %24, %57 : vector<64x16xi32>
    %cst_11 = arith.constant 9.99999993E-9 : f32
    %59 = vector.broadcast %cst_11 : f32 to vector<64x1xf32>
    %60 = arith.addf %56, %59 : vector<64x1xf32>
    %61 = tpu.reciprocal %60 {approx = true} : vector<64x1xf32> -> vector<64x1xf32>
    %cst_12 = arith.constant 0.000000e+00 : f32
    %62 = vector.shape_cast %61 : vector<64x1xf32> to vector<64x1xf32>
    %63 = vector.broadcast %62 : vector<64x1xf32> to vector<64x16xf32>
    %64 = vector.broadcast %cst_12 : f32 to vector<64x16xf32>
    %65 = arith.select %58, %63, %64 : vector<64x16xi1>, vector<64x16xf32>
    %66 = arith.addf %47, %65 : vector<64x16xf32>
    %67 = arith.addf %43, %61 : vector<64x1xf32>
    %cst_13 = arith.constant 0x7F800000 : f32
    %68 = vector.broadcast %cst_13 : f32 to vector<64x16xf32>
    %69 = arith.select %58, %68, %49 : vector<64x16xi1>, vector<64x16xf32>
    %cst_14 = arith.constant dense<0x7F800000> : vector<64xf32>
    %70 = vector.multi_reduction <minimumf>, %69, %cst_14 [1] : vector<64x16xf32> to vector<64xf32>
    %71 = vector.shape_cast %70 : vector<64xf32> to vector<64x1xf32>
    %72 = tpu.bitcast %71 : vector<64x1xf32> -> vector<64x1xi32>
    %c15_i32_15 = arith.constant 15 : i32
    %73 = vector.broadcast %c15_i32_15 : i32 to vector<64x1xi32>
    %74 = arith.andi %72, %73 : vector<64x1xi32>
    %75 = arith.subi %72, %74 : vector<64x1xi32>
    %76 = tpu.bitcast %75 : vector<64x1xi32> -> vector<64x1xf32>
    %77 = vector.broadcast %74 : vector<64x1xi32> to vector<64x16xi32>
    %78 = arith.cmpi eq, %24, %77 : vector<64x16xi32>
    %cst_16 = arith.constant 9.99999993E-9 : f32
    %79 = vector.broadcast %cst_16 : f32 to vector<64x1xf32>
    %80 = arith.addf %76, %79 : vector<64x1xf32>
    %81 = tpu.reciprocal %80 {approx = true} : vector<64x1xf32> -> vector<64x1xf32>
    %cst_17 = arith.constant 0.000000e+00 : f32
    %82 = vector.shape_cast %81 : vector<64x1xf32> to vector<64x1xf32>
    %83 = vector.broadcast %82 : vector<64x1xf32> to vector<64x16xf32>
    %84 = vector.broadcast %cst_17 : f32 to vector<64x16xf32>
    %85 = arith.select %78, %83, %84 : vector<64x16xi1>, vector<64x16xf32>
    %86 = arith.addf %66, %85 : vector<64x16xf32>
    %87 = arith.addf %67, %81 : vector<64x1xf32>
    %88 = tpu.reciprocal %87 {approx = true} : vector<64x1xf32> -> vector<64x1xf32>
    %89 = vector.broadcast %88 : vector<64x1xf32> to vector<64x16xf32>
    %90 = arith.mulf %86, %89 : vector<64x16xf32>
    %91 = arith.truncf %90 : vector<64x16xf32> to vector<64x16xbf16>
    %c0_18 = arith.constant 0 : index
    %c0_19 = arith.constant 0 : index
    %c0_20 = arith.constant 0 : index
    %92 = vector.load %arg4[%c0_18, %c0_19, %c0_20] : memref<1x16x32xbf16, #tpu.memory_space<vmem>>, vector<1x16x32xbf16>
    %93 = vector.shape_cast %92 : vector<1x16x32xbf16> to vector<16x32xbf16>
    %cst_21 = arith.constant dense<0.000000e+00> : vector<64x32xf32>
    %94 = tpu.matmul %91, %93, %cst_21 {dimension_numbers = #tpu.dot_dimension_numbers<[1], [0], [0], [1], [0, 0, 1, 1], [], []>} : vector<64x16xbf16>, vector<16x32xbf16>, vector<64x32xf32> -> vector<64x32xf32>
    %95 = arith.truncf %94 : vector<64x32xf32> to vector<64x32xbf16>
    %c0_22 = arith.constant 0 : index
    %c0_23 = arith.constant 0 : index
    %96 = vector.load %arg6[%c0_22, %c0_23] : memref<32x64xbf16, #tpu.memory_space<vmem>>, vector<32x64xbf16>
    %cst_24 = arith.constant dense<0.000000e+00> : vector<64x64xf32>
    %97 = tpu.matmul %95, %96, %cst_24 {dimension_numbers = #tpu.dot_dimension_numbers<[1], [0], [0], [1], [0, 0, 1, 1], [], []>} : vector<64x32xbf16>, vector<32x64xbf16>, vector<64x64xf32> -> vector<64x64xf32>
    %c0_25 = arith.constant 0 : index
    %c0_26 = arith.constant 0 : index
    %c0_27 = arith.constant 0 : index
    %98 = vector.load %arg5[%c0_25, %c0_26, %c0_27] : memref<1x64x16xbf16, #tpu.memory_space<vmem>>, vector<1x64x16xbf16>
    %99 = vector.shape_cast %98 : vector<1x64x16xbf16> to vector<64x16xbf16>
    %c0_28 = arith.constant 0 : index
    %c0_29 = arith.constant 0 : index
    %100 = vector.load %arg7[%c0_28, %c0_29] : memref<16x64xbf16, #tpu.memory_space<vmem>>, vector<16x64xbf16>
    %cst_30 = arith.constant dense<0.000000e+00> : vector<64x64xf32>
    %101 = tpu.matmul %99, %100, %cst_30 {dimension_numbers = #tpu.dot_dimension_numbers<[1], [0], [0], [1], [0, 0, 1, 1], [], []>} : vector<64x16xbf16>, vector<16x64xbf16>, vector<64x64xf32> -> vector<64x64xf32>
    %102 = arith.addf %97, %101 : vector<64x64xf32>
    %c0_31 = arith.constant 0 : index
    %c0_32 = arith.constant 0 : index
    %103 = vector.load %arg8[%c0_31, %c0_32] : memref<1x64xf32, #tpu.memory_space<vmem>>, vector<1x64xf32>
    %104 = vector.broadcast %103 : vector<1x64xf32> to vector<64x64xf32>
    %105 = arith.addf %102, %104 : vector<64x64xf32>
    %cst_33 = arith.constant 0.000000e+00 : f32
    %106 = vector.broadcast %cst_33 : f32 to vector<64x64xf32>
    %107 = arith.maximumf %105, %106 : vector<64x64xf32>
    %108 = arith.truncf %107 : vector<64x64xf32> to vector<64x64xbf16>
    %c0_34 = arith.constant 0 : index
    %c0_35 = arith.constant 0 : index
    %109 = vector.load %arg9[%c0_34, %c0_35] : memref<64x32xbf16, #tpu.memory_space<vmem>>, vector<64x32xbf16>
    %cst_36 = arith.constant dense<0.000000e+00> : vector<64x32xf32>
    %110 = tpu.matmul %108, %109, %cst_36 {dimension_numbers = #tpu.dot_dimension_numbers<[1], [0], [0], [1], [0, 0, 1, 1], [], []>} : vector<64x64xbf16>, vector<64x32xbf16>, vector<64x32xf32> -> vector<64x32xf32>
    %c0_37 = arith.constant 0 : index
    %c0_38 = arith.constant 0 : index
    %111 = vector.load %arg10[%c0_37, %c0_38] : memref<1x32xf32, #tpu.memory_space<vmem>>, vector<1x32xf32>
    %112 = vector.broadcast %111 : vector<1x32xf32> to vector<64x32xf32>
    %113 = arith.addf %110, %112 : vector<64x32xf32>
    %cst_39 = arith.constant 0.000000e+00 : f32
    %114 = vector.broadcast %cst_39 : f32 to vector<64x32xf32>
    %115 = arith.maximumf %113, %114 : vector<64x32xf32>
    %c0_40 = arith.constant 0 : index
    %c0_41 = arith.constant 0 : index
    %c0_42 = arith.constant 0 : index
    %116 = vector.load %arg11[%c0_40, %c0_41, %c0_42] : memref<1x64x32xf32, #tpu.memory_space<vmem>>, vector<1x64x32xf32>
    %117 = vector.shape_cast %116 : vector<1x64x32xf32> to vector<64x32xf32>
    %118 = vector.shape_cast %115 : vector<64x32xf32> to vector<1x64x32xf32>
    tpu.vector_store %arg11[%c0_40, %c0_41, %c0_42], %118 {strides = array<i32>} : memref<1x64x32xf32, #tpu.memory_space<vmem>>, vector<1x64x32xf32>,
    return
  }
  func.func @transform_0(%arg0: i32, %arg1: i32) -> (i32, i32, i32) {
    %c0_i32 = arith.constant 0 : i32
    %c0_i32_0 = arith.constant 0 : i32
    return %arg0, %arg1, %c0_i32 : i32, i32, i32
  }
  func.func @transform_1(%arg0: i32, %arg1: i32) -> (i32, i32, i32) {
    %c0_i32 = arith.constant 0 : i32
    %c0_i32_0 = arith.constant 0 : i32
    %c0_i32_1 = arith.constant 0 : i32
    return %arg0, %c0_i32, %c0_i32_0 : i32, i32, i32
  }
  func.func @transform_2(%arg0: i32, %arg1: i32) -> (i32, i32, i32) {
    %c0_i32 = arith.constant 0 : i32
    %c0_i32_0 = arith.constant 0 : i32
    %c0_i32_1 = arith.constant 0 : i32
    return %arg0, %c0_i32, %c0_i32_0 : i32, i32, i32
  }
  func.func @transform_3(%arg0: i32, %arg1: i32) -> (i32, i32, i32) {
    %c0_i32 = arith.constant 0 : i32
    %c0_i32_0 = arith.constant 0 : i32
    return %arg0, %arg1, %c0_i32 : i32, i32, i32
  }
  func.func @transform_4(%arg0: i32, %arg1: i32) -> (i32, i32) {
    %c0_i32 = arith.constant 0 : i32
    %c0_i32_0 = arith.constant 0 : i32
    %c0_i32_1 = arith.constant 0 : i32
    return %c0_i32, %c0_i32_0 : i32, i32
  }
  func.func @transform_5(%arg0: i32, %arg1: i32) -> (i32, i32) {
    %c0_i32 = arith.constant 0 : i32
    %c0_i32_0 = arith.constant 0 : i32
    %c0_i32_1 = arith.constant 0 : i32
    return %c0_i32, %c0_i32_0 : i32, i32
  }
  func.func @transform_6(%arg0: i32, %arg1: i32) -> (i32, i32) {
    %c0_i32 = arith.constant 0 : i32
    %c0_i32_0 = arith.constant 0 : i32
    %c0_i32_1 = arith.constant 0 : i32
    return %c0_i32, %c0_i32_0 : i32, i32
  }
  func.func @transform_7(%arg0: i32, %arg1: i32) -> (i32, i32) {
    %c0_i32 = arith.constant 0 : i32
    %c0_i32_0 = arith.constant 0 : i32
    %c0_i32_1 = arith.constant 0 : i32
    return %c0_i32, %c0_i32_0 : i32, i32
  }
  func.func @transform_8(%arg0: i32, %arg1: i32) -> (i32, i32) {
    %c0_i32 = arith.constant 0 : i32
    %c0_i32_0 = arith.constant 0 : i32
    %c0_i32_1 = arith.constant 0 : i32
    return %c0_i32, %c0_i32_0 : i32, i32
  }
  func.func @transform_9(%arg0: i32, %arg1: i32) -> (i32, i32, i32) {
    %c0_i32 = arith.constant 0 : i32
    %c0_i32_0 = arith.constant 0 : i32
    return %arg0, %arg1, %c0_i32 : i32, i32, i32
  }
}

</mosaic_0001>

<llo_original>
// kernel: tpu_custom_call.1
$region0: #{tpu_custom_call.1}
  #allocation0 [shape = 'u32[]', space=smem, size = 0x4, offset = 0x4, fixed_abs, tag = 'smem constant byte address 0x4 - core index']
  #allocation1 [shape = 'u32[72,128]{1,0:T(1,128)}', space=vmem, size = 0x9000, scoped, tag = 'internal scratch']
  %s0 = inlined_call_operand.vmem [shape: f32[2,128,3], index: 0, kind: input, shape index: {}]
  %s1 = inlined_call_operand.vmem [shape: f32[2,3,16], index: 1, kind: input, shape index: {}]
  %s2 = inlined_call_operand.vmem [shape: bf16[2,16,32], index: 2, kind: input, shape index: {}]
  %s3 = inlined_call_operand.vmem [shape: bf16[2,128,16], index: 3, kind: input, shape index: {}]
  %s4 = inlined_call_operand.vmem [shape: bf16[32,64], index: 4, kind: input, shape index: {}]
  %s5 = inlined_call_operand.vmem [shape: bf16[16,64], index: 5, kind: input, shape index: {}]
  %s6 = inlined_call_operand.vmem [shape: f32[1,64], index: 6, kind: input, shape index: {}]
  %s7 = inlined_call_operand.vmem [shape: bf16[64,32], index: 7, kind: input, shape index: {}]
  %s8 = inlined_call_operand.vmem [shape: f32[1,32], index: 8, kind: input, shape index: {}]
  %s9 = inlined_call_operand.vmem [shape: f32[2,128,32], index: 9, kind: output, shape index: {}]
  %s10 = sld [smem:[#allocation0]]
  $region69: #{tpu_custom_call.1} parent=0
    _
  %s12 = ssub.s32 1, %s10
  %s13 = scalar_select 0, %s12, %s10
  loop: start=0, step=1, limit=6
  $region2: #{tpu_custom_call.1} parent=0 // loop_pre_header
    _
  $region3: #{tpu_custom_call.1} parent=0 // loop_header
    %s15 = sphi 0, %s19
    %p16 = scmp.ge.s32.totalorder %s15, 6
    %s22 = sphi 0, %s34
    %s23 = sphi 0, %s30
    %s24 = sphi 0, %s22
    %s25 = sphi 0, %s23
    %s26 = sphi 0, %s24
    %s27 = sphi 0, %s25
    %s39 = sphi 0, %s41
    %s42 = sphi 0, %s39
    %s43 = sphi 0, %s42
    %s59 = sphi 0, %s43
    %s65 = sphi 0, %s67
    %s68 = sphi 0, %s65
    %s69 = sphi 0, %s68
    %s85 = sphi 0, %s69
    %s91 = sphi 0, %s93
    %s94 = sphi 0, %s91
    %s95 = sphi 0, %s94
    %s111 = sphi 0, %s95
    %s119 = sphi 0, %s121
    %s122 = sphi 0, %s119
    %s123 = sphi 0, %s122
    %s139 = sphi 0, %s123
    %s143 = sphi 0, %s143
    %s145 = sphi 0, %s143
    %s146 = sphi 0, %s145
    %s160 = sphi 0, %s146
    %s164 = sphi 0, %s164
    %s166 = sphi 0, %s164
    %s167 = sphi 0, %s166
    %s181 = sphi 0, %s167
    %s185 = sphi 0, %s185
    %s187 = sphi 0, %s185
    %s188 = sphi 0, %s187
    %s202 = sphi 0, %s188
    %s206 = sphi 0, %s206
    %s208 = sphi 0, %s206
    %s209 = sphi 0, %s208
    %s223 = sphi 0, %s209
    %s227 = sphi 0, %s227
    %s229 = sphi 0, %s227
    %s230 = sphi 0, %s229
    %s244 = sphi 0, %s230
    %s252 = sphi 0, %s254
    %s255 = sphi 0, %s252
    %s256 = sphi 0, %s255
    %s272 = sphi 0, %s256
  $region4: #{tpu_custom_call.1} parent=0 // loop_header_branch
    %18 = sbr.rel (%p16) target = $region8
  $region5: #{tpu_custom_call.1} parent=0 // loop_body
    %s20 = ssub.s32 %s15, 1
    %s21 = ssub.s32 %s15, 2
    %s28 = sadd.s32 1, %s23
    %p29 = scmp.ge.s32.totalorder %s28, 2
    %s30 = scalar_select %p29, 0, %s28
    %s31 = sadd.s32 1, %s22
    %s32 = scalar_select %p29, %s31, %s22
    %p33 = scmp.ge.s32.totalorder %s32, 2
    %s34 = scalar_select %p33, 0, %s32
    %s35 = ssub.s32 %s22, %s34
    %s36 = ssub.s32 %s23, %s30
    %s37 = sor.u32 %s35, %s36
    %p38 = scmp.eq.s32.totalorder %s37, 0
    %s40 = sadd.s32 %s39, 1
    %s41 = scalar_select %p38, %s39, %s40
    %p44 = pneg %p38
    %p45 = scmp.eq.s32.totalorder %s15, 3
    %p46 = por %p44, %p45
    %p47 = scmp.ne.s32.totalorder %s39, %s42
    %p48 = scmp.eq.s32.totalorder %s15, 0
    %p49 = por %p47, %p48
    %p50 = scmp.ne.s32.totalorder %s39, %s42
    %p51 = scmp.eq.s32.totalorder %s20, 3
    %p52 = por %p50, %p51
    %p53 = scmp.ne.s32.totalorder %s42, %s43
    %p54 = scmp.eq.s32.totalorder %s20, 0
    %p55 = por %p53, %p54
    %p56 = scmp.ne.s32.totalorder %s42, %s43
    %p57 = scmp.eq.s32.totalorder %s21, 3
    %p58 = por %p56, %p57
    %p60 = scmp.ne.s32.totalorder %s43, %s59
    %p61 = scmp.eq.s32.totalorder %s21, 0
    %p62 = por %p60, %p61
    %s63 = ssub.s32 %s22, %s34
    %p64 = scmp.eq.s32.totalorder %s63, 0
    %s66 = sadd.s32 %s65, 1
    %s67 = scalar_select %p64, %s65, %s66
    %p70 = pneg %p64
    %p71 = scmp.eq.s32.totalorder %s15, 3
    %p72 = por %p70, %p71
    %p73 = scmp.ne.s32.totalorder %s65, %s68
    %p74 = scmp.eq.s32.totalorder %s15, 0
    %p75 = por %p73, %p74
    %p76 = scmp.ne.s32.totalorder %s65, %s68
    %p77 = scmp.eq.s32.totalorder %s20, 3
    %p78 = por %p76, %p77
    %p79 = scmp.ne.s32.totalorder %s68, %s69
    %p80 = scmp.eq.s32.totalorder %s20, 0
    %p81 = por %p79, %p80
    %p82 = scmp.ne.s32.totalorder %s68, %s69
    %p83 = scmp.eq.s32.totalorder %s21, 3
    %p84 = por %p82, %p83
    %p86 = scmp.ne.s32.totalorder %s69, %s85
    %p87 = scmp.eq.s32.totalorder %s21, 0
    %p88 = por %p86, %p87
    %s89 = ssub.s32 %s22, %s34
    %p90 = scmp.eq.s32.totalorder %s89, 0
    %s92 = sadd.s32 %s91, 1
    %s93 = scalar_select %p90, %s91, %s92
    %p96 = pneg %p90
    %p97 = scmp.eq.s32.totalorder %s15, 3
    %p98 = por %p96, %p97
    %p99 = scmp.ne.s32.totalorder %s91, %s94
    %p100 = scmp.eq.s32.totalorder %s15, 0
    %p101 = por %p99, %p100
    %p102 = scmp.ne.s32.totalorder %s91, %s94
    %p103 = scmp.eq.s32.totalorder %s20, 3
    %p104 = por %p102, %p103
    %p105 = scmp.ne.s32.totalorder %s94, %s95
    %p106 = scmp.eq.s32.totalorder %s20, 0
    %p107 = por %p105, %p106
    %p108 = scmp.ne.s32.totalorder %s94, %s95
    %p109 = scmp.eq.s32.totalorder %s21, 3
    %p110 = por %p108, %p109
    %p112 = scmp.ne.s32.totalorder %s95, %s111
    %p113 = scmp.eq.s32.totalorder %s21, 0
    %p114 = por %p112, %p113
    %s115 = ssub.s32 %s22, %s34
    %s116 = ssub.s32 %s23, %s30
    %s117 = sor.u32 %s115, %s116
    %p118 = scmp.eq.s32.totalorder %s117, 0
    %s120 = sadd.s32 %s119, 1
    %s121 = scalar_select %p118, %s119, %s120
    %p124 = pneg %p118
    %p125 = scmp.eq.s32.totalorder %s15, 3
    %p126 = por %p124, %p125
    %p127 = scmp.ne.s32.totalorder %s119, %s122
    %p128 = scmp.eq.s32.totalorder %s15, 0
    %p129 = por %p127, %p128
    %p130 = scmp.ne.s32.totalorder %s119, %s122
    %p131 = scmp.eq.s32.totalorder %s20, 3
    %p132 = por %p130, %p131
    %p133 = scmp.ne.s32.totalorder %s122, %s123
    %p134 = scmp.eq.s32.totalorder %s20, 0
    %p135 = por %p133, %p134
    %p136 = scmp.ne.s32.totalorder %s122, %s123
    %p137 = scmp.eq.s32.totalorder %s21, 3
    %p138 = por %p136, %p137
    %p140 = scmp.ne.s32.totalorder %s123, %s139
    %p141 = scmp.eq.s32.totalorder %s21, 0
    %p142 = por %p140, %p141
    %s144 = sadd.s32 %s143, 1
    %p147 = scmp.eq.s32.totalorder %s15, 3
    %p148 = scmp.ne.s32.totalorder %s143, %s145
    %p149 = scmp.eq.s32.totalorder %s15, 0
    %p150 = por %p148, %p149
    %p151 = scmp.ne.s32.totalorder %s143, %s145
    %p152 = scmp.eq.s32.totalorder %s20, 3
    %p153 = por %p151, %p152
    %p154 = scmp.ne.s32.totalorder %s145, %s146
    %p155 = scmp.eq.s32.totalorder %s20, 0
    %p156 = por %p154, %p155
    %p157 = scmp.ne.s32.totalorder %s145, %s146
    %p158 = scmp.eq.s32.totalorder %s21, 3
    %p159 = por %p157, %p158
    %p161 = scmp.ne.s32.totalorder %s146, %s160
    %p162 = scmp.eq.s32.totalorder %s21, 0
    %p163 = por %p161, %p162
    %s165 = sadd.s32 %s164, 1
    %p168 = scmp.eq.s32.totalorder %s15, 3
    %p169 = scmp.ne.s32.totalorder %s164, %s166
    %p170 = scmp.eq.s32.totalorder %s15, 0
    %p171 = por %p169, %p170
    %p172 = scmp.ne.s32.totalorder %s164, %s166
    %p173 = scmp.eq.s32.totalorder %s20, 3
    %p174 = por %p172, %p173
    %p175 = scmp.ne.s32.totalorder %s166, %s167
    %p176 = scmp.eq.s32.totalorder %s20, 0
    %p177 = por %p175, %p176
    %p178 = scmp.ne.s32.totalorder %s166, %s167
    %p179 = scmp.eq.s32.totalorder %s21, 3
    %p180 = por %p178, %p179
    %p182 = scmp.ne.s32.totalorder %s167, %s181
    %p183 = scmp.eq.s32.totalorder %s21, 0
    %p184 = por %p182, %p183
    %s186 = sadd.s32 %s185, 1
    %p189 = scmp.eq.s32.totalorder %s15, 3
    %p190 = scmp.ne.s32.totalorder %s185, %s187
    %p191 = scmp.eq.s32.totalorder %s15, 0
    %p192 = por %p190, %p191
    %p193 = scmp.ne.s32.totalorder %s185, %s187
    %p194 = scmp.eq.s32.totalorder %s20, 3
    %p195 = por %p193, %p194
    %p196 = scmp.ne.s32.totalorder %s187, %s188
    %p197 = scmp.eq.s32.totalorder %s20, 0
    %p198 = por %p196, %p197
    %p199 = scmp.ne.s32.totalorder %s187, %s188
    %p200 = scmp.eq.s32.totalorder %s21, 3
    %p201 = por %p199, %p200
    %p203 = scmp.ne.s32.totalorder %s188, %s202
    %p204 = scmp.eq.s32.totalorder %s21, 0
    %p205 = por %p203, %p204
    %s207 = sadd.s32 %s206, 1
    %p210 = scmp.eq.s32.totalorder %s15, 3
    %p211 = scmp.ne.s32.totalorder %s206, %s208
    %p212 = scmp.eq.s32.totalorder %s15, 0
    %p213 = por %p211, %p212
    %p214 = scmp.ne.s32.totalorder %s206, %s208
    %p215 = scmp.eq.s32.totalorder %s20, 3
    %p216 = por %p214, %p215
    %p217 = scmp.ne.s32.totalorder %s208, %s209
    %p218 = scmp.eq.s32.totalorder %s20, 0
    %p219 = por %p217, %p218
    %p220 = scmp.ne.s32.totalorder %s208, %s209
    %p221 = scmp.eq.s32.totalorder %s21, 3
    %p222 = por %p220, %p221
    %p224 = scmp.ne.s32.totalorder %s209, %s223
    %p225 = scmp.eq.s32.totalorder %s21, 0
    %p226 = por %p224, %p225
    %s228 = sadd.s32 %s227, 1
    %p231 = scmp.eq.s32.totalorder %s15, 3
    %p232 = scmp.ne.s32.totalorder %s227, %s229
    %p233 = scmp.eq.s32.totalorder %s15, 0
    %p234 = por %p232, %p233
    %p235 = scmp.ne.s32.totalorder %s227, %s229
    %p236 = scmp.eq.s32.totalorder %s20, 3
    %p237 = por %p235, %p236
    %p238 = scmp.ne.s32.totalorder %s229, %s230
    %p239 = scmp.eq.s32.totalorder %s20, 0
    %p240 = por %p238, %p239
    %p241 = scmp.ne.s32.totalorder %s229, %s230
    %p242 = scmp.eq.s32.totalorder %s21, 3
    %p243 = por %p241, %p242
    %p245 = scmp.ne.s32.totalorder %s230, %s244
    %p246 = scmp.eq.s32.totalorder %s21, 0
    %p247 = por %p245, %p246
    %s248 = ssub.s32 %s22, %s34
    %s249 = ssub.s32 %s23, %s30
    %s250 = sor.u32 %s248, %s249
    %p251 = scmp.eq.s32.totalorder %s250, 0
    %s253 = sadd.s32 %s252, 1
    %s254 = scalar_select %p251, %s252, %s253
    %p257 = pneg %p251
    %p258 = scmp.eq.s32.totalorder %s15, 3
    %p259 = por %p257, %p258
    %p260 = scmp.ne.s32.totalorder %s252, %s255
    %p261 = scmp.eq.s32.totalorder %s15, 0
    %p262 = por %p260, %p261
    %p263 = scmp.ne.s32.totalorder %s252, %s255
    %p264 = scmp.eq.s32.totalorder %s20, 3
    %p265 = por %p263, %p264
    %p266 = scmp.ne.s32.totalorder %s255, %s256
    %p267 = scmp.eq.s32.totalorder %s20, 0
    %p268 = por %p266, %p267
    %p269 = scmp.ne.s32.totalorder %s255, %s256
    %p270 = scmp.eq.s32.totalorder %s21, 3
    %p271 = por %p269, %p270
    %p273 = scmp.ne.s32.totalorder %s256, %s272
    %p274 = scmp.eq.s32.totalorder %s21, 0
    %p275 = por %p273, %p274
    %p276 = scmp.le.s32.totalorder 1, %s15
    %p277 = scmp.lt.s32.totalorder %s15, 5
    %p278 = pnand %p276, %p277
    %p279 = pneg %p278
    // Predicated region
    $region9: #{tpu_custom_call.1} parent=5 // pred_check
      _
    $region10: #{tpu_custom_call.1} parent=5 // pred_check_branch
      %281 = sbr.rel (%p278) target = $region12
    $region11: #{tpu_custom_call.1} parent=5 // pred_region
      %s282 = ssub.s32 %s15, 1
      // Predicated region
      $region13: #{tpu_custom_call.1} parent=11 // pred_check
        %p283 = pneg %p81
      $region14: #{tpu_custom_call.1} parent=11 // pred_check_branch
        %285 = sbr.rel (%p283) target = $region16
      $region15: #{tpu_custom_call.1} parent=11 // pred_region
        %p286 = scmp.lt.s32.totalorder %s24, 1
        %s287 = scalar_select %p286, %s24, 1
        %s288 = smul.addr %s287, 4
        %s289 = scalar_lea.vmem %s1, %s288
      $region16: #{tpu_custom_call.1} parent=11 // pred_fallthru
        _
      // Predicated region
      $region17: #{tpu_custom_call.1} parent=11 // pred_check
        %p290 = pneg %p107
      $region18: #{tpu_custom_call.1} parent=11 // pred_check_branch
        %292 = sbr.rel (%p290) target = $region20
      $region19: #{tpu_custom_call.1} parent=11 // pred_region
        %p293 = scmp.lt.s32.totalorder %s24, 1
        %s294 = scalar_select %p293, %s24, 1
        %s295 = smul.addr %s294, 2
        %s296 = smul.addr %s295, 4
        %s297 = scalar_lea.vmem %s2, %s296
      $region20: #{tpu_custom_call.1} parent=11 // pred_fallthru
        _
      // Predicated region
      $region21: #{tpu_custom_call.1} parent=11 // pred_check
        %p298 = pneg %p156
      $region22: #{tpu_custom_call.1} parent=11 // pred_check_branch
        %300 = sbr.rel (%p298) target = $region24
      $region23: #{tpu_custom_call.1} parent=11 // pred_region
        _
      $region24: #{tpu_custom_call.1} parent=11 // pred_fallthru
        _
      // Predicated region
      $region25: #{tpu_custom_call.1} parent=11 // pred_check
        %p301 = pneg %p177
      $region26: #{tpu_custom_call.1} parent=11 // pred_check_branch
        %303 = sbr.rel (%p301) target = $region28
      $region27: #{tpu_custom_call.1} parent=11 // pred_region
        _
      $region28: #{tpu_custom_call.1} parent=11 // pred_fallthru
        _
      // Predicated region
      $region29: #{tpu_custom_call.1} parent=11 // pred_check
        %p304 = pneg %p198
      $region30: #{tpu_custom_call.1} parent=11 // pred_check_branch
        %306 = sbr.rel (%p304) target = $region32
      $region31: #{tpu_custom_call.1} parent=11 // pred_region
        _
      $region32: #{tpu_custom_call.1} parent=11 // pred_fallthru
        _
      // Predicated region
      $region33: #{tpu_custom_call.1} parent=11 // pred_check
        %p307 = pneg %p219
      $region34: #{tpu_custom_call.1} parent=11 // pred_check_branch
        %309 = sbr.rel (%p307) target = $region36
      $region35: #{tpu_custom_call.1} parent=11 // pred_region
        _
      $region36: #{tpu_custom_call.1} parent=11 // pred_fallthru
        _
      // Predicated region
      $region37: #{tpu_custom_call.1} parent=11 // pred_check
        %p310 = pneg %p240
      $region38: #{tpu_custom_call.1} parent=11 // pred_check_branch
        %312 = sbr.rel (%p310) target = $region40
      $region39: #{tpu_custom_call.1} parent=11 // pred_region
        _
      $region40: #{tpu_custom_call.1} parent=11 // pred_fallthru
        _
    $region12: #{tpu_custom_call.1} parent=5 // pred_fallthru
      _
    %p313 = scmp.lt.s32.totalorder %s15, 4
    // Predicated region
    $region41: #{tpu_custom_call.1} parent=5 // pred_check
      %p314 = pneg %p313
    $region42: #{tpu_custom_call.1} parent=5 // pred_check_branch
      %316 = sbr.rel (%p314) target = $region44
    $region43: #{tpu_custom_call.1} parent=5 // pred_region
      // Predicated region
      $region45: #{tpu_custom_call.1} parent=43 // pred_check
        %p317 = pneg %p49
      $region46: #{tpu_custom_call.1} parent=43 // pred_check_branch
        %319 = sbr.rel (%p317) target = $region48
      $region47: #{tpu_custom_call.1} parent=43 // pred_region
        %s320 = smul.u32 8, %s23
        %p321 = scmp.lt.s32.totalorder %s22, 1
        %s322 = scalar_select %p321, %s22, 1
        %p323 = scmp.lt.s32.totalorder %s320, 15
        %s324 = scalar_select %p323, %s320, 15
        %s325 = smul.addr %s322, 16
        %s326 = sadd.s32 %s324, %s325
        %s327 = smul.addr %s326, 8
        %s328 = scalar_lea.vmem %s0, %s327
        %s329 = smul.u32 8, %s23
      $region48: #{tpu_custom_call.1} parent=43 // pred_fallthru
        _
      // Predicated region
      $region49: #{tpu_custom_call.1} parent=43 // pred_check
        %p330 = pneg %p129
      $region50: #{tpu_custom_call.1} parent=43 // pred_check_branch
        %332 = sbr.rel (%p330) target = $region52
      $region51: #{tpu_custom_call.1} parent=43 // pred_region
        %s333 = smul.u32 8, %s23
        %p334 = scmp.lt.s32.totalorder %s22, 1
        %s335 = scalar_select %p334, %s22, 1
        %p336 = scmp.lt.s32.totalorder %s333, 15
        %s337 = scalar_select %p336, %s333, 15
        %s338 = smul.addr %s335, 16
        %s339 = sadd.s32 %s337, %s338
        %s340 = smul.addr %s339, 4
        %s341 = scalar_lea.vmem %s3, %s340
        %s342 = smul.u32 8, %s23
      $region52: #{tpu_custom_call.1} parent=43 // pred_fallthru
        _
    $region44: #{tpu_custom_call.1} parent=5 // pred_fallthru
      _
    %p343 = scmp.le.s32.totalorder 1, %s15
    %p344 = scmp.lt.s32.totalorder %s15, 5
    %p345 = pnand %p343, %p344
    %p346 = pneg %p345
    // Predicated region
    $region53: #{tpu_custom_call.1} parent=5 // pred_check
      _
    $region54: #{tpu_custom_call.1} parent=5 // pred_check_branch
      %348 = sbr.rel (%p345) target = $region56
    $region55: #{tpu_custom_call.1} parent=5 // pred_region
      %s349 = ssub.s32 %s15, 1
      %s350 = smul.u32 8, %s25
      %p351 = scmp.lt.s32.totalorder %s24, 1
      %s352 = scalar_select %p351, %s24, 1
      %p353 = scmp.lt.s32.totalorder %s350, 15
      %s354 = scalar_select %p353, %s350, 15
      %s355 = smul.addr %s352, 16
      %s356 = sadd.s32 %s354, %s355
      %s357 = smul.addr %s356, 8
      %s358 = scalar_lea.vmem %s0, %s357
      %p359 = pneg %p55
      %p360 = pneg %p52
      %p361 = scmp.lt.s32.totalorder %s24, 1
      %s362 = scalar_select %p361, %s24, 1
      %s363 = smul.addr %s362, 4
      %s364 = scalar_lea.vmem %s1, %s363
      %p365 = pneg %p81
      %p366 = pneg %p78
      %p367 = scmp.lt.s32.totalorder %s24, 1
      %s368 = scalar_select %p367, %s24, 1
      %s369 = smul.addr %s368, 2
      %s370 = smul.addr %s369, 4
      %s371 = scalar_lea.vmem %s2, %s370
      %p372 = pneg %p107
      %p373 = pneg %p104
      %s374 = smul.u32 8, %s25
      %p375 = scmp.lt.s32.totalorder %s24, 1
      %s376 = scalar_select %p375, %s24, 1
      %p377 = scmp.lt.s32.totalorder %s374, 15
      %s378 = scalar_select %p377, %s374, 15
      %s379 = smul.addr %s376, 16
      %s380 = sadd.s32 %s378, %s379
      %s381 = smul.addr %s380, 4
      %s382 = scalar_lea.vmem %s3, %s381
      %p383 = pneg %p135
      %p384 = pneg %p132
      %p385 = pneg %p156
      %p386 = pneg %p153
      %p387 = pneg %p177
      %p388 = pneg %p174
      %p389 = pneg %p198
      %p390 = pneg %p195
      %p391 = pneg %p219
      %p392 = pneg %p216
      %p393 = pneg %p240
      %p394 = pneg %p237
      %p395 = pneg %p268
      %p396 = pneg %p265
      %s397 = smul.u32 8, %s25
      %p398 = scmp.lt.s32.totalorder %s24, 1
      %s399 = scalar_select %p398, %s24, 1
      %p400 = scmp.lt.s32.totalorder %s397, 15
      %s401 = scalar_select %p400, %s397, 15
      %s402 = smul.addr %s399, 16
      %s403 = sadd.s32 %s401, %s402
      %s404 = smul.addr %s403, 8
      %s405 = scalar_lea.vmem %s9, %s404
      %s406 = smul.u32 8, %s25
      %p407 = scmp.lt.s32.totalorder %s24, 1
      %s408 = scalar_select %p407, %s24, 1
      %p409 = scmp.lt.s32.totalorder %s406, 15
      %s410 = scalar_select %p409, %s406, 15
      %s411 = smul.addr %s408, 16
      %s412 = sadd.s32 %s410, %s411
      %s413 = smul.addr %s412, 8
      %s414 = scalar_lea.vmem %s0, %s413
      %s415 = smul.u32 8, %s25
      %p416 = scmp.lt.s32.totalorder %s24, 1
      %s417 = scalar_select %p416, %s24, 1
      %s418 = smul.addr %s417, 4
      %s419 = scalar_lea.vmem %s1, %s418
      %p420 = scmp.lt.s32.totalorder %s24, 1
      %s421 = scalar_select %p420, %s24, 1
      %s422 = smul.addr %s421, 2
      %s423 = smul.addr %s422, 4
      %s424 = scalar_lea.vmem %s2, %s423
      %s425 = smul.u32 8, %s25
      %p426 = scmp.lt.s32.totalorder %s24, 1
      %s427 = scalar_select %p426, %s24, 1
      %p428 = scmp.lt.s32.totalorder %s425, 15
      %s429 = scalar_select %p428, %s425, 15
      %s430 = smul.addr %s427, 16
      %s431 = sadd.s32 %s429, %s430
      %s432 = smul.addr %s431, 4
      %s433 = scalar_lea.vmem %s3, %s432
      %s434 = smul.u32 8, %s25
      %s435 = smul.u32 8, %s25
      %p436 = scmp.lt.s32.totalorder %s24, 1
      %s437 = scalar_select %p436, %s24, 1
      %p438 = scmp.lt.s32.totalorder %s435, 15
      %s439 = scalar_select %p438, %s435, 15
      %s440 = smul.addr %s437, 16
      %s441 = sadd.s32 %s439, %s440
      %s442 = smul.addr %s441, 8
      %s443 = scalar_lea.vmem %s9, %s442
      %s444 = smul.u32 8, %s25
      %v446 = vld [vmem:[%s414] sm:$0xff]
      %v447 = vld [vmem:[%s414 + $0x8] sm:$0xff]
      %v448 = vld [vmem:[%s414 + $0x10] sm:$0xff]
      %v449 = vld [vmem:[%s414 + $0x18] sm:$0xff]
      %v450 = vld [vmem:[%s414 + $0x20] sm:$0xff]
      %v451 = vld [vmem:[%s414 + $0x28] sm:$0xff]
      %v452 = vld [vmem:[%s414 + $0x30] sm:$0xff]
      %v453 = vld [vmem:[%s414 + $0x38] sm:$0xff]
      %v454 = vld [vmem:[%s419] sm:$0x7]
      %456 = vset.pattern.permute.xlu0 0
      %457 = vperm.xlu0 %456, %v446
      %v458 = vpop.permute.xlu0 %457
      %461 = vset.pattern.permute.xlu0 0
      %462 = vperm.xlu0 %461, %v447
      %v463 = vpop.permute.xlu0 %462
      %466 = vset.pattern.permute.xlu0 0
      %467 = vperm.xlu0 %466, %v448
      %v468 = vpop.permute.xlu0 %467
      %471 = vset.pattern.permute.xlu0 0
      %472 = vperm.xlu0 %471, %v449
      %v473 = vpop.permute.xlu0 %472
      %476 = vset.pattern.permute.xlu0 0
      %477 = vperm.xlu0 %476, %v450
      %v478 = vpop.permute.xlu0 %477
      %481 = vset.pattern.permute.xlu0 0
      %482 = vperm.xlu0 %481, %v451
      %v483 = vpop.permute.xlu0 %482
      %486 = vset.pattern.permute.xlu0 0
      %487 = vperm.xlu0 %486, %v452
      %v488 = vpop.permute.xlu0 %487
      %491 = vset.pattern.permute.xlu0 0
      %492 = vperm.xlu0 %491, %v453
      %v493 = vpop.permute.xlu0 %492
      %v495 = vperm.slane %v454, 0
      %v496 = vsub.f32 %v458, %v495
      %v497 = vsub.f32 %v463, %v495
      %v498 = vsub.f32 %v468, %v495
      %v499 = vsub.f32 %v473, %v495
      %v500 = vsub.f32 %v478, %v495
      %v501 = vsub.f32 %v483, %v495
      %v502 = vsub.f32 %v488, %v495
      %v503 = vsub.f32 %v493, %v495
      %v504 = vmul.f32 %v496, %v496
      %v505 = vmul.f32 %v497, %v497
      %v506 = vmul.f32 %v498, %v498
      %v507 = vmul.f32 %v499, %v499
      %v508 = vmul.f32 %v500, %v500
      %v509 = vmul.f32 %v501, %v501
      %v510 = vmul.f32 %v502, %v502
      %v511 = vmul.f32 %v503, %v503
      %512 = vset.pattern.permute.xlu0 1
      %513 = vperm.xlu0 %512, %v446
      %v514 = vpop.permute.xlu0 %513
      %516 = vset.pattern.permute.xlu0 1
      %517 = vperm.xlu0 %516, %v447
      %v518 = vpop.permute.xlu0 %517
      %520 = vset.pattern.permute.xlu0 1
      %521 = vperm.xlu0 %520, %v448
      %v522 = vpop.permute.xlu0 %521
      %524 = vset.pattern.permute.xlu0 1
      %525 = vperm.xlu0 %524, %v449
      %v526 = vpop.permute.xlu0 %525
      %528 = vset.pattern.permute.xlu0 1
      %529 = vperm.xlu0 %528, %v450
      %v530 = vpop.permute.xlu0 %529
      %532 = vset.pattern.permute.xlu0 1
      %533 = vperm.xlu0 %532, %v451
      %v534 = vpop.permute.xlu0 %533
      %536 = vset.pattern.permute.xlu0 1
      %537 = vperm.xlu0 %536, %v452
      %v538 = vpop.permute.xlu0 %537
      %540 = vset.pattern.permute.xlu0 1
      %541 = vperm.xlu0 %540, %v453
      %v542 = vpop.permute.xlu0 %541
      %v544 = vperm.slane %v454, 1
      %v545 = vsub.f32 %v514, %v544
      %v546 = vsub.f32 %v518, %v544
      %v547 = vsub.f32 %v522, %v544
      %v548 = vsub.f32 %v526, %v544
      %v549 = vsub.f32 %v530, %v544
      %v550 = vsub.f32 %v534, %v544
      %v551 = vsub.f32 %v538, %v544
      %v552 = vsub.f32 %v542, %v544
      %v553 = vmul.f32 %v545, %v545
      %v554 = vmul.f32 %v546, %v546
      %v555 = vmul.f32 %v547, %v547
      %v556 = vmul.f32 %v548, %v548
      %v557 = vmul.f32 %v549, %v549
      %v558 = vmul.f32 %v550, %v550
      %v559 = vmul.f32 %v551, %v551
      %v560 = vmul.f32 %v552, %v552
      %v561 = vadd.f32 %v504, %v553
      %v562 = vadd.f32 %v505, %v554
      %v563 = vadd.f32 %v506, %v555
      %v564 = vadd.f32 %v507, %v556
      %v565 = vadd.f32 %v508, %v557
      %v566 = vadd.f32 %v509, %v558
      %v567 = vadd.f32 %v510, %v559
      %v568 = vadd.f32 %v511, %v560
      %569 = vset.pattern.permute.xlu0 2
      %570 = vperm.xlu0 %569, %v446
      %v571 = vpop.permute.xlu0 %570
      %573 = vset.pattern.permute.xlu0 2
      %574 = vperm.xlu0 %573, %v447
      %v575 = vpop.permute.xlu0 %574
      %577 = vset.pattern.permute.xlu0 2
      %578 = vperm.xlu0 %577, %v448
      %v579 = vpop.permute.xlu0 %578
      %581 = vset.pattern.permute.xlu0 2
      %582 = vperm.xlu0 %581, %v449
      %v583 = vpop.permute.xlu0 %582
      %585 = vset.pattern.permute.xlu0 2
      %586 = vperm.xlu0 %585, %v450
      %v587 = vpop.permute.xlu0 %586
      %589 = vset.pattern.permute.xlu0 2
      %590 = vperm.xlu0 %589, %v451
      %v591 = vpop.permute.xlu0 %590
      %593 = vset.pattern.permute.xlu0 2
      %594 = vperm.xlu0 %593, %v452
      %v595 = vpop.permute.xlu0 %594
      %597 = vset.pattern.permute.xlu0 2
      %598 = vperm.xlu0 %597, %v453
      %v599 = vpop.permute.xlu0 %598
      %v601 = vperm.slane %v454, 2
      %v602 = vsub.f32 %v571, %v601
      %v603 = vsub.f32 %v575, %v601
      %v604 = vsub.f32 %v579, %v601
      %v605 = vsub.f32 %v583, %v601
      %v606 = vsub.f32 %v587, %v601
      %v607 = vsub.f32 %v591, %v601
      %v608 = vsub.f32 %v595, %v601
      %v609 = vsub.f32 %v599, %v601
      %v610 = vmul.f32 %v602, %v602
      %v611 = vmul.f32 %v603, %v603
      %v612 = vmul.f32 %v604, %v604
      %v613 = vmul.f32 %v605, %v605
      %v614 = vmul.f32 %v606, %v606
      %v615 = vmul.f32 %v607, %v607
      %v616 = vmul.f32 %v608, %v608
      %v617 = vmul.f32 %v609, %v609
      %v618 = vadd.f32 %v561, %v610
      %v619 = vadd.f32 %v562, %v611
      %v620 = vadd.f32 %v563, %v612
      %v621 = vadd.f32 %v564, %v613
      %v622 = vadd.f32 %v565, %v614
      %v623 = vadd.f32 %v566, %v615
      %v624 = vadd.f32 %v567, %v616
      %v625 = vadd.f32 %v568, %v617
      %v626 = vlaneseq
      %v627 = vand.u32 %v626, 127
      %v636 = vshra.s32 %v618, 4
      %v637 = vshra.s32 %v619, 4
      %v638 = vshra.s32 %v620, 4
      %v639 = vshra.s32 %v621, 4
      %v640 = vshra.s32 %v622, 4
      %v641 = vshra.s32 %v623, 4
      %v642 = vshra.s32 %v624, 4
      %v643 = vshra.s32 %v625, 4
      %v644 = vshll.u32 %v636, 4
      %v645 = vshll.u32 %v637, 4
      %v646 = vshll.u32 %v638, 4
      %v647 = vshll.u32 %v639, 4
      %v648 = vshll.u32 %v640, 4
      %v649 = vshll.u32 %v641, 4
      %v650 = vshll.u32 %v642, 4
      %v651 = vshll.u32 %v643, 4
      %v652 = vor.u32 %v644, %v627
      %v653 = vor.u32 %v645, %v627
      %v654 = vor.u32 %v646, %v627
      %v655 = vor.u32 %v647, %v627
      %v656 = vor.u32 %v648, %v627
      %v657 = vor.u32 %v649, %v627
      %v658 = vor.u32 %v650, %v627
      %v659 = vor.u32 %v651, %v627
      %vm668 = vcmask 130048
      %v669 = vsel %vm668, %v652, inf
      %670 = vmin.xlane.f32.xlu0 %v669
      %v671 = vpop.xlane.xlu0 %670
      %v672 = vsel %vm668, %v653, inf
      %673 = vmin.xlane.f32.xlu0 %v672
      %v674 = vpop.xlane.xlu0 %673
      %v675 = vsel %vm668, %v654, inf
      %676 = vmin.xlane.f32.xlu0 %v675
      %v677 = vpop.xlane.xlu0 %676
      %v678 = vsel %vm668, %v655, inf
      %679 = vmin.xlane.f32.xlu0 %v678
      %v680 = vpop.xlane.xlu0 %679
      %v681 = vsel %vm668, %v656, inf
      %682 = vmin.xlane.f32.xlu0 %v681
      %v683 = vpop.xlane.xlu0 %682
      %v684 = vsel %vm668, %v657, inf
      %685 = vmin.xlane.f32.xlu0 %v684
      %v686 = vpop.xlane.xlu0 %685
      %v687 = vsel %vm668, %v658, inf
      %688 = vmin.xlane.f32.xlu0 %v687
      %v689 = vpop.xlane.xlu0 %688
      %v690 = vsel %vm668, %v659, inf
      %691 = vmin.xlane.f32.xlu0 %v690
      %v692 = vpop.xlane.xlu0 %691
      %v701 = vand.u32 %v671, 15
      %v702 = vand.u32 %v674, 15
      %v703 = vand.u32 %v677, 15
      %v704 = vand.u32 %v680, 15
      %v705 = vand.u32 %v683, 15
      %v706 = vand.u32 %v686, 15
      %v707 = vand.u32 %v689, 15
      %v708 = vand.u32 %v692, 15
      %v709 = vsub.s32 %v671, %v701
      %v710 = vsub.s32 %v674, %v702
      %v711 = vsub.s32 %v677, %v703
      %v712 = vsub.s32 %v680, %v704
      %v713 = vsub.s32 %v683, %v705
      %v714 = vsub.s32 %v686, %v706
      %v715 = vsub.s32 %v689, %v707
      %v716 = vsub.s32 %v692, %v708
      %vm725 = vcmp.eq.s32.totalorder %v627, %v701
      %vm726 = vcmp.eq.s32.totalorder %v627, %v702
      %vm727 = vcmp.eq.s32.totalorder %v627, %v703
      %vm728 = vcmp.eq.s32.totalorder %v627, %v704
      %vm729 = vcmp.eq.s32.totalorder %v627, %v705
      %vm730 = vcmp.eq.s32.totalorder %v627, %v706
      %vm731 = vcmp.eq.s32.totalorder %v627, %v707
      %vm732 = vcmp.eq.s32.totalorder %v627, %v708
      %v733 = vadd.f32 %v709, 1e-08
      %v734 = vadd.f32 %v710, 1e-08
      %v735 = vadd.f32 %v711, 1e-08
      %v736 = vadd.f32 %v712, 1e-08
      %v737 = vadd.f32 %v713, 1e-08
      %v738 = vadd.f32 %v714, 1e-08
      %v739 = vadd.f32 %v715, 1e-08
      %v740 = vadd.f32 %v716, 1e-08
      %v741 = vrcp.pop %v733
      %v742 = vrcp.pop %v734
      %v743 = vrcp.pop %v735
      %v744 = vrcp.pop %v736
      %v745 = vrcp.pop %v737
      %v746 = vrcp.pop %v738
      %v747 = vrcp.pop %v739
      %v748 = vrcp.pop %v740
      %v749 = vsel %vm725, %v741, 0.0
      %v750 = vsel %vm726, %v742, 0.0
      %v751 = vsel %vm727, %v743, 0.0
      %v752 = vsel %vm728, %v744, 0.0
      %v753 = vsel %vm729, %v745, 0.0
      %v754 = vsel %vm730, %v746, 0.0
      %v755 = vsel %vm731, %v747, 0.0
      %v756 = vsel %vm732, %v748, 0.0
      %v757 = vsel %vm725, inf, %v652
      %v758 = vsel %vm726, inf, %v653
      %v759 = vsel %vm727, inf, %v654
      %v760 = vsel %vm728, inf, %v655
      %v761 = vsel %vm729, inf, %v656
      %v762 = vsel %vm730, inf, %v657
      %v763 = vsel %vm731, inf, %v658
      %v764 = vsel %vm732, inf, %v659
      %v765 = vsel %vm668, %v757, inf
      %766 = vmin.xlane.f32.xlu0 %v765
      %v767 = vpop.xlane.xlu0 %766
      %v768 = vsel %vm668, %v758, inf
      %769 = vmin.xlane.f32.xlu0 %v768
      %v770 = vpop.xlane.xlu0 %769
      %v771 = vsel %vm668, %v759, inf
      %772 = vmin.xlane.f32.xlu0 %v771
      %v773 = vpop.xlane.xlu0 %772
      %v774 = vsel %vm668, %v760, inf
      %775 = vmin.xlane.f32.xlu0 %v774
      %v776 = vpop.xlane.xlu0 %775
      %v777 = vsel %vm668, %v761, inf
      %778 = vmin.xlane.f32.xlu0 %v777
      %v779 = vpop.xlane.xlu0 %778
      %v780 = vsel %vm668, %v762, inf
      %781 = vmin.xlane.f32.xlu0 %v780
      %v782 = vpop.xlane.xlu0 %781
      %v783 = vsel %vm668, %v763, inf
      %784 = vmin.xlane.f32.xlu0 %v783
      %v785 = vpop.xlane.xlu0 %784
      %v786 = vsel %vm668, %v764, inf
      %787 = vmin.xlane.f32.xlu0 %v786
      %v788 = vpop.xlane.xlu0 %787
      %v797 = vand.u32 %v767, 15
      %v798 = vand.u32 %v770, 15
      %v799 = vand.u32 %v773, 15
      %v800 = vand.u32 %v776, 15
      %v801 = vand.u32 %v779, 15
      %v802 = vand.u32 %v782, 15
      %v803 = vand.u32 %v785, 15
      %v804 = vand.u32 %v788, 15
      %v805 = vsub.s32 %v767, %v797
      %v806 = vsub.s32 %v770, %v798
      %v807 = vsub.s32 %v773, %v799
      %v808 = vsub.s32 %v776, %v800
      %v809 = vsub.s32 %v779, %v801
      %v810 = vsub.s32 %v782, %v802
      %v811 = vsub.s32 %v785, %v803
      %v812 = vsub.s32 %v788, %v804
      %vm821 = vcmp.eq.s32.totalorder %v627, %v797
      %vm822 = vcmp.eq.s32.totalorder %v627, %v798
      %vm823 = vcmp.eq.s32.totalorder %v627, %v799
      %vm824 = vcmp.eq.s32.totalorder %v627, %v800
      %vm825 = vcmp.eq.s32.totalorder %v627, %v801
      %vm826 = vcmp.eq.s32.totalorder %v627, %v802
      %vm827 = vcmp.eq.s32.totalorder %v627, %v803
      %vm828 = vcmp.eq.s32.totalorder %v627, %v804
      %v829 = vadd.f32 %v805, 1e-08
      %v830 = vadd.f32 %v806, 1e-08
      %v831 = vadd.f32 %v807, 1e-08
      %v832 = vadd.f32 %v808, 1e-08
      %v833 = vadd.f32 %v809, 1e-08
      %v834 = vadd.f32 %v810, 1e-08
      %v835 = vadd.f32 %v811, 1e-08
      %v836 = vadd.f32 %v812, 1e-08
      %v837 = vrcp.pop %v829
      %v838 = vrcp.pop %v830
      %v839 = vrcp.pop %v831
      %v840 = vrcp.pop %v832
      %v841 = vrcp.pop %v833
      %v842 = vrcp.pop %v834
      %v843 = vrcp.pop %v835
      %v844 = vrcp.pop %v836
      %v845 = vsel %vm821, %v837, 0.0
      %v846 = vsel %vm822, %v838, 0.0
      %v847 = vsel %vm823, %v839, 0.0
      %v848 = vsel %vm824, %v840, 0.0
      %v849 = vsel %vm825, %v841, 0.0
      %v850 = vsel %vm826, %v842, 0.0
      %v851 = vsel %vm827, %v843, 0.0
      %v852 = vsel %vm828, %v844, 0.0
      %v853 = vadd.f32 %v749, %v845
      %v854 = vadd.f32 %v750, %v846
      %v855 = vadd.f32 %v751, %v847
      %v856 = vadd.f32 %v752, %v848
      %v857 = vadd.f32 %v753, %v849
      %v858 = vadd.f32 %v754, %v850
      %v859 = vadd.f32 %v755, %v851
      %v860 = vadd.f32 %v756, %v852
      %v861 = vadd.f32 %v741, %v837
      %v862 = vadd.f32 %v742, %v838
      %v863 = vadd.f32 %v743, %v839
      %v864 = vadd.f32 %v744, %v840
      %v865 = vadd.f32 %v745, %v841
      %v866 = vadd.f32 %v746, %v842
      %v867 = vadd.f32 %v747, %v843
      %v868 = vadd.f32 %v748, %v844
      %v869 = vsel %vm821, inf, %v757
      %v870 = vsel %vm822, inf, %v758
      %v871 = vsel %vm823, inf, %v759
      %v872 = vsel %vm824, inf, %v760
      %v873 = vsel %vm825, inf, %v761
      %v874 = vsel %vm826, inf, %v762
      %v875 = vsel %vm827, inf, %v763
      %v876 = vsel %vm828, inf, %v764
      %v877 = vsel %vm668, %v869, inf
      %878 = vmin.xlane.f32.xlu0 %v877
      %v879 = vpop.xlane.xlu0 %878
      %v880 = vsel %vm668, %v870, inf
      %881 = vmin.xlane.f32.xlu0 %v880
      %v882 = vpop.xlane.xlu0 %881
      %v883 = vsel %vm668, %v871, inf
      %884 = vmin.xlane.f32.xlu0 %v883
      %v885 = vpop.xlane.xlu0 %884
      %v886 = vsel %vm668, %v872, inf
      %887 = vmin.xlane.f32.xlu0 %v886
      %v888 = vpop.xlane.xlu0 %887
      %v889 = vsel %vm668, %v873, inf
      %890 = vmin.xlane.f32.xlu0 %v889
      %v891 = vpop.xlane.xlu0 %890
      %v892 = vsel %vm668, %v874, inf
      %893 = vmin.xlane.f32.xlu0 %v892
      %v894 = vpop.xlane.xlu0 %893
      %v895 = vsel %vm668, %v875, inf
      %896 = vmin.xlane.f32.xlu0 %v895
      %v897 = vpop.xlane.xlu0 %896
      %v898 = vsel %vm668, %v876, inf
      %899 = vmin.xlane.f32.xlu0 %v898
      %v900 = vpop.xlane.xlu0 %899
      %v909 = vand.u32 %v879, 15
      %v910 = vand.u32 %v882, 15
      %v911 = vand.u32 %v885, 15
      %v912 = vand.u32 %v888, 15
      %v913 = vand.u32 %v891, 15
      %v914 = vand.u32 %v894, 15
      %v915 = vand.u32 %v897, 15
      %v916 = vand.u32 %v900, 15
      %v917 = vsub.s32 %v879, %v909
      %v918 = vsub.s32 %v882, %v910
      %v919 = vsub.s32 %v885, %v911
      %v920 = vsub.s32 %v888, %v912
      %v921 = vsub.s32 %v891, %v913
      %v922 = vsub.s32 %v894, %v914
      %v923 = vsub.s32 %v897, %v915
      %v924 = vsub.s32 %v900, %v916
      %vm933 = vcmp.eq.s32.totalorder %v627, %v909
      %vm934 = vcmp.eq.s32.totalorder %v627, %v910
      %vm935 = vcmp.eq.s32.totalorder %v627, %v911
      %vm936 = vcmp.eq.s32.totalorder %v627, %v912
      %vm937 = vcmp.eq.s32.totalorder %v627, %v913
      %vm938 = vcmp.eq.s32.totalorder %v627, %v914
      %vm939 = vcmp.eq.s32.totalorder %v627, %v915
      %vm940 = vcmp.eq.s32.totalorder %v627, %v916
      %v941 = vadd.f32 %v917, 1e-08
      %v942 = vadd.f32 %v918, 1e-08
      %v943 = vadd.f32 %v919, 1e-08
      %v944 = vadd.f32 %v920, 1e-08
      %v945 = vadd.f32 %v921, 1e-08
      %v946 = vadd.f32 %v922, 1e-08
      %v947 = vadd.f32 %v923, 1e-08
      %v948 = vadd.f32 %v924, 1e-08
      %v949 = vrcp.pop %v941
      %v950 = vrcp.pop %v942
      %v951 = vrcp.pop %v943
      %v952 = vrcp.pop %v944
      %v953 = vrcp.pop %v945
      %v954 = vrcp.pop %v946
      %v955 = vrcp.pop %v947
      %v956 = vrcp.pop %v948
      %v957 = vsel %vm933, %v949, 0.0
      %v958 = vsel %vm934, %v950, 0.0
      %v959 = vsel %vm935, %v951, 0.0
      %v960 = vsel %vm936, %v952, 0.0
      %v961 = vsel %vm937, %v953, 0.0
      %v962 = vsel %vm938, %v954, 0.0
      %v963 = vsel %vm939, %v955, 0.0
      %v964 = vsel %vm940, %v956, 0.0
      %v965 = vadd.f32 %v853, %v957
      %v966 = vadd.f32 %v854, %v958
      %v967 = vadd.f32 %v855, %v959
      %v968 = vadd.f32 %v856, %v960
      %v969 = vadd.f32 %v857, %v961
      %v970 = vadd.f32 %v858, %v962
      %v971 = vadd.f32 %v859, %v963
      %v972 = vadd.f32 %v860, %v964
      %v973 = vadd.f32 %v861, %v949
      %v974 = vadd.f32 %v862, %v950
      %v975 = vadd.f32 %v863, %v951
      %v976 = vadd.f32 %v864, %v952
      %v977 = vadd.f32 %v865, %v953
      %v978 = vadd.f32 %v866, %v954
      %v979 = vadd.f32 %v867, %v955
      %v980 = vadd.f32 %v868, %v956
      %v981 = vrcp.pop %v973
      %v982 = vrcp.pop %v974
      %v983 = vrcp.pop %v975
      %v984 = vrcp.pop %v976
      %v985 = vrcp.pop %v977
      %v986 = vrcp.pop %v978
      %v987 = vrcp.pop %v979
      %v988 = vrcp.pop %v980
      %v989 = vmul.f32 %v965, %v981
      %v990 = vmul.f32 %v966, %v982
      %v991 = vmul.f32 %v967, %v983
      %v992 = vmul.f32 %v968, %v984
      %v993 = vmul.f32 %v969, %v985
      %v994 = vmul.f32 %v970, %v986
      %v995 = vmul.f32 %v971, %v987
      %v996 = vmul.f32 %v972, %v988
      %v997 = vpack.c.bf16 %v990, %v989
      %v998 = vpack.c.bf16 %v992, %v991
      %v999 = vpack.c.bf16 %v994, %v993
      %v1000 = vpack.c.bf16 %v996, %v995
      %v1001 = vld [vmem:[%s424] sm:$0xf]
      %v1002 = vld [vmem:[%s424 + $0x4] sm:$0xf]
      %v1005 = vunpack.c.l.b16 %v1001
      %v1006 = vunpack.c.l.b16 %v1002
      %v1007 = vpack.c.b16 %v1006, %v1005
      %v1010 = vsel %vm668, %v997, 0
      %v1013 = vsel %vm668, %v998, 0
      %v1016 = vsel %vm668, %v999, 0
      %v1019 = vsel %vm668, %v1000, 0
      %1021 = vmatpush.bf16.msra.mxu0 0
      %1022 = vmatpush.bf16.msra.mxu0 0
      %1023 = vmatpush.bf16.msra.mxu0 0
      %1024 = vmatpush.bf16.msra.mxu0 0
      %1025 = vmatpush.bf16.msra.mxu0 0
      %1026 = vmatpush.bf16.msra.mxu0 0
      %1027 = vmatpush.bf16.msra.mxu0 0
      %1028 = vmatpush.bf16.msra.mxu0 %v1007
      %1029 = vmatmul.bf16.gmra.mxu0 %v1010
      %v1030 = vpop.f32.mrf.mxu0
      %v1031 = vadd.f32 0.0, %v1030
      %v1032 = vpop.f32.mrf.mxu0
      %v1033 = vadd.f32 0.0, %v1032
      %1034 = vmatmul.bf16.gmra.mxu0 %v1013
      %v1035 = vpop.f32.mrf.mxu0
      %v1036 = vadd.f32 0.0, %v1035
      %v1037 = vpop.f32.mrf.mxu0
      %v1038 = vadd.f32 0.0, %v1037
      %1039 = vmatmul.bf16.gmra.mxu0 %v1016
      %v1040 = vpop.f32.mrf.mxu0
      %v1041 = vadd.f32 0.0, %v1040
      %v1042 = vpop.f32.mrf.mxu0
      %v1043 = vadd.f32 0.0, %v1042
      %1044 = vmatmul.bf16.gmra.mxu0 %v1019
      %v1045 = vpop.f32.mrf.mxu0
      %v1046 = vadd.f32 0.0, %v1045
      %v1047 = vpop.f32.mrf.mxu0
      %v1048 = vadd.f32 0.0, %v1047
      %1049 = vdwg.mxu0
      %v1050 = vpack.c.bf16 %v1033, %v1031
      %v1051 = vpack.c.bf16 %v1038, %v1036
      %v1052 = vpack.c.bf16 %v1043, %v1041
      %v1053 = vpack.c.bf16 %v1048, %v1046
      %v1054 = vld [vmem:[%s4] sm:$0xf]
      %v1055 = vld [vmem:[%s4 + $0x4] sm:$0xf]
      %v1056 = vld [vmem:[%s4 + $0x8] sm:$0xf]
      %v1057 = vld [vmem:[%s4 + $0xc] sm:$0xf]
      %v1058 = vld [vmem:[%s433] sm:$0xf]
      %v1059 = vld [vmem:[%s433 + $0x4] sm:$0xf]
      %v1060 = vld [vmem:[%s433 + $0x8] sm:$0xf]
      %v1061 = vld [vmem:[%s433 + $0xc] sm:$0xf]
      %v1062 = vld [vmem:[%s433 + $0x10] sm:$0xf]
      %v1063 = vld [vmem:[%s433 + $0x14] sm:$0xf]
      %v1064 = vld [vmem:[%s433 + $0x18] sm:$0xf]
      %v1065 = vld [vmem:[%s433 + $0x1c] sm:$0xf]
      %v1066 = vld [vmem:[%s5] sm:$0xf]
      %v1067 = vld [vmem:[%s5 + $0x4] sm:$0xf]
      %v1076 = vunpack.c.l.b16 %v1058
      %v1077 = vunpack.c.l.b16 %v1059
      %v1078 = vunpack.c.l.b16 %v1060
      %v1079 = vunpack.c.l.b16 %v1061
      %v1080 = vunpack.c.l.b16 %v1062
      %v1081 = vunpack.c.l.b16 %v1063
      %v1082 = vunpack.c.l.b16 %v1064
      %v1083 = vunpack.c.l.b16 %v1065
      %v1084 = vpack.c.b16 %v1077, %v1076
      %v1085 = vpack.c.b16 %v1079, %v1078
      %v1086 = vpack.c.b16 %v1081, %v1080
      %v1087 = vpack.c.b16 %v1083, %v1082
      %v1090 = vunpack.c.l.b16 %v1066
      %v1091 = vunpack.c.l.b16 %v1067
      %v1092 = vpack.c.b16 %v1091, %v1090
      %v1095 = vsel %vm668, %v1084, 0
      %v1098 = vsel %vm668, %v1085, 0
      %v1101 = vsel %vm668, %v1086, 0
      %v1104 = vsel %vm668, %v1087, 0
      %1106 = vmatpush.bf16.msra.mxu0 0
      %1107 = vmatpush.bf16.msra.mxu0 0
      %1108 = vmatpush.bf16.msra.mxu0 0
      %1109 = vmatpush.bf16.msra.mxu0 0
      %1110 = vmatpush.bf16.msra.mxu0 0
      %1111 = vmatpush.bf16.msra.mxu0 0
      %1112 = vmatpush.bf16.msra.mxu0 0
      %1113 = vmatpush.bf16.msra.mxu0 %v1092
      %1114 = vmatmul.bf16.gmra.mxu0 %v1095
      %v1115 = vpop.f32.mrf.mxu0
      %v1116 = vadd.f32 0.0, %v1115
      %v1117 = vpop.f32.mrf.mxu0
      %v1118 = vadd.f32 0.0, %v1117
      %1119 = vmatmul.bf16.gmra.mxu0 %v1098
      %v1120 = vpop.f32.mrf.mxu0
      %v1121 = vadd.f32 0.0, %v1120
      %v1122 = vpop.f32.mrf.mxu0
      %v1123 = vadd.f32 0.0, %v1122
      %1124 = vmatmul.bf16.gmra.mxu0 %v1101
      %v1125 = vpop.f32.mrf.mxu0
      %v1126 = vadd.f32 0.0, %v1125
      %v1127 = vpop.f32.mrf.mxu0
      %v1128 = vadd.f32 0.0, %v1127
      %1129 = vmatmul.bf16.gmra.mxu0 %v1104
      %v1130 = vpop.f32.mrf.mxu0
      %v1131 = vadd.f32 0.0, %v1130
      %v1132 = vpop.f32.mrf.mxu0
      %v1133 = vadd.f32 0.0, %v1132
      %1134 = vdwg.mxu0
      %v1139 = vunpack.c.l.b16 %v1054
      %v1140 = vunpack.c.l.b16 %v1055
      %v1141 = vunpack.c.l.b16 %v1056
      %v1142 = vunpack.c.l.b16 %v1057
      %v1143 = vpack.c.b16 %v1140, %v1139
      %v1144 = vpack.c.b16 %v1142, %v1141
      %vm1147 = vcmask 261120
      %v1149 = vsel %vm1147, %v1050, 0
      %v1152 = vsel %vm1147, %v1051, 0
      %v1155 = vsel %vm1147, %v1052, 0
      %v1158 = vsel %vm1147, %v1053, 0
      %1160 = vmatpush.bf16.msra.mxu0 0
      %1161 = vmatpush.bf16.msra.mxu0 0
      %1162 = vmatpush.bf16.msra.mxu0 0
      %1163 = vmatpush.bf16.msra.mxu0 0
      %1164 = vmatpush.bf16.msra.mxu0 0
      %1165 = vmatpush.bf16.msra.mxu0 0
      %1166 = vmatpush.bf16.msra.mxu0 %v1144
      %1167 = vmatpush.bf16.msra.mxu0 %v1143
      %1168 = vmatmul.bf16.gmra.mxu0 %v1149
      %v1169 = vpop.f32.mrf.mxu0
      %v1170 = vadd.f32 %v1116, %v1169
      %v1171 = vpop.f32.mrf.mxu0
      %v1172 = vadd.f32 %v1118, %v1171
      %1173 = vmatmul.bf16.gmra.mxu0 %v1152
      %v1174 = vpop.f32.mrf.mxu0
      %v1175 = vadd.f32 %v1121, %v1174
      %v1176 = vpop.f32.mrf.mxu0
      %v1177 = vadd.f32 %v1123, %v1176
      %1178 = vmatmul.bf16.gmra.mxu0 %v1155
      %v1179 = vpop.f32.mrf.mxu0
      %v1180 = vadd.f32 %v1126, %v1179
      %v1181 = vpop.f32.mrf.mxu0
      %v1182 = vadd.f32 %v1128, %v1181
      %1183 = vmatmul.bf16.gmra.mxu0 %v1158
      %v1184 = vpop.f32.mrf.mxu0
      %v1185 = vadd.f32 %v1131, %v1184
      %v1186 = vpop.f32.mrf.mxu0
      %v1187 = vadd.f32 %v1133, %v1186
      %1188 = vdwg.mxu0
      %v1189 = vld [vmem:[%s6] sm:$0x1]
      %v1191 = vperm.slane %v1189, 0
      %v1193 = vadd.f32 %v1170, %v1191
      %v1194 = vadd.f32 %v1172, %v1191
      %v1195 = vadd.f32 %v1175, %v1191
      %v1196 = vadd.f32 %v1177, %v1191
      %v1197 = vadd.f32 %v1180, %v1191
      %v1198 = vadd.f32 %v1182, %v1191
      %v1199 = vadd.f32 %v1185, %v1191
      %v1200 = vadd.f32 %v1187, %v1191
      %v1201 = vmax.f32 %v1193, 0.0
      %v1202 = vmax.f32 %v1194, 0.0
      %v1203 = vmax.f32 %v1195, 0.0
      %v1204 = vmax.f32 %v1196, 0.0
      %v1205 = vmax.f32 %v1197, 0.0
      %v1206 = vmax.f32 %v1198, 0.0
      %v1207 = vmax.f32 %v1199, 0.0
      %v1208 = vmax.f32 %v1200, 0.0
      %v1209 = vpack.c.bf16 %v1202, %v1201
      %v1210 = vpack.c.bf16 %v1204, %v1203
      %v1211 = vpack.c.bf16 %v1206, %v1205
      %v1212 = vpack.c.bf16 %v1208, %v1207
      %v1213 = vld [vmem:[%s7] sm:$0xf]
      %v1214 = vld [vmem:[%s7 + $0x4] sm:$0xf]
      %v1215 = vld [vmem:[%s7 + $0x8] sm:$0xf]
      %v1216 = vld [vmem:[%s7 + $0xc] sm:$0xf]
      %v1217 = vld [vmem:[%s7 + $0x10] sm:$0xf]
      %v1218 = vld [vmem:[%s7 + $0x14] sm:$0xf]
      %v1219 = vld [vmem:[%s7 + $0x18] sm:$0xf]
      %v1220 = vld [vmem:[%s7 + $0x1c] sm:$0xf]
      %v1221 = vld [vmem:[%s8] sm:$0x1]
      %v1223 = vperm.slane %v1221, 0
      %v1233 = vunpack.c.l.b16 %v1213
      %v1234 = vunpack.c.l.b16 %v1214
      %v1235 = vunpack.c.l.b16 %v1215
      %v1236 = vunpack.c.l.b16 %v1216
      %v1237 = vunpack.c.l.b16 %v1217
      %v1238 = vunpack.c.l.b16 %v1218
      %v1239 = vunpack.c.l.b16 %v1219
      %v1240 = vunpack.c.l.b16 %v1220
      %v1241 = vpack.c.b16 %v1234, %v1233
      %v1242 = vpack.c.b16 %v1236, %v1235
      %v1243 = vpack.c.b16 %v1238, %v1237
      %v1244 = vpack.c.b16 %v1240, %v1239
      %vm1249 = vcmask 523264
      %v1251 = vsel %vm1249, %v1209, 0
      %v1254 = vsel %vm1249, %v1210, 0
      %v1257 = vsel %vm1249, %v1211, 0
      %v1260 = vsel %vm1249, %v1212, 0
      %1262 = vmatpush.bf16.msra.mxu0 0
      %1263 = vmatpush.bf16.msra.mxu0 0
      %1264 = vmatpush.bf16.msra.mxu0 0
      %1265 = vmatpush.bf16.msra.mxu0 0
      %1266 = vmatpush.bf16.msra.mxu0 %v1244
      %1267 = vmatpush.bf16.msra.mxu0 %v1243
      %1268 = vmatpush.bf16.msra.mxu0 %v1242
      %1269 = vmatpush.bf16.msra.mxu0 %v1241
      %1270 = vmatmul.bf16.gmra.mxu0 %v1251
      %v1271 = vpop.f32.mrf.mxu0
      %v1272 = vadd.f32 %v1223, %v1271
      %v1273 = vpop.f32.mrf.mxu0
      %v1274 = vadd.f32 %v1223, %v1273
      %1275 = vmatmul.bf16.gmra.mxu0 %v1254
      %v1276 = vpop.f32.mrf.mxu0
      %v1277 = vadd.f32 %v1223, %v1276
      %v1278 = vpop.f32.mrf.mxu0
      %v1279 = vadd.f32 %v1223, %v1278
      %1280 = vmatmul.bf16.gmra.mxu0 %v1257
      %v1281 = vpop.f32.mrf.mxu0
      %v1282 = vadd.f32 %v1223, %v1281
      %v1283 = vpop.f32.mrf.mxu0
      %v1284 = vadd.f32 %v1223, %v1283
      %1285 = vmatmul.bf16.gmra.mxu0 %v1260
      %v1286 = vpop.f32.mrf.mxu0
      %v1287 = vadd.f32 %v1223, %v1286
      %v1288 = vpop.f32.mrf.mxu0
      %v1289 = vadd.f32 %v1223, %v1288
      %1290 = vdwg.mxu0
      %v1291 = vmax.f32 %v1272, 0.0
      %v1292 = vmax.f32 %v1274, 0.0
      %v1293 = vmax.f32 %v1277, 0.0
      %v1294 = vmax.f32 %v1279, 0.0
      %v1295 = vmax.f32 %v1282, 0.0
      %v1296 = vmax.f32 %v1284, 0.0
      %v1297 = vmax.f32 %v1287, 0.0
      %v1298 = vmax.f32 %v1289, 0.0
      %1299 = vst.msk [vmem:[%s443] sm:$0xff] %vm1147, %v1291
      %1300 = vst.msk [vmem:[%s443 + $0x8] sm:$0xff] %vm1147, %v1292
      %1301 = vst.msk [vmem:[%s443 + $0x10] sm:$0xff] %vm1147, %v1293
      %1302 = vst.msk [vmem:[%s443 + $0x18] sm:$0xff] %vm1147, %v1294
      %1303 = vst.msk [vmem:[%s443 + $0x20] sm:$0xff] %vm1147, %v1295
      %1304 = vst.msk [vmem:[%s443 + $0x28] sm:$0xff] %vm1147, %v1296
      %1305 = vst.msk [vmem:[%s443 + $0x30] sm:$0xff] %vm1147, %v1297
      %1306 = vst.msk [vmem:[%s443 + $0x38] sm:$0xff] %vm1147, %v1298
      %s1307 = smul.u32 8, %s25
      %p1308 = scmp.lt.s32.totalorder %s24, 1
      %s1309 = scalar_select %p1308, %s24, 1
      %p1310 = scmp.lt.s32.totalorder %s1307, 15
      %s1311 = scalar_select %p1310, %s1307, 15
      %s1312 = smul.addr %s1309, 16
      %s1313 = sadd.s32 %s1311, %s1312
      %s1314 = smul.addr %s1313, 8
      %s1315 = scalar_lea.vmem %s9, %s1314
      // Predicated region
      $region57: #{tpu_custom_call.1} parent=55 // pred_check
        %p1316 = pneg %p265
      $region58: #{tpu_custom_call.1} parent=55 // pred_check_branch
        %1318 = sbr.rel (%p1316) target = $region60
      $region59: #{tpu_custom_call.1} parent=55 // pred_region
        %s1319 = smul.u32 8, %s25
      $region60: #{tpu_custom_call.1} parent=55 // pred_fallthru
        _
    $region56: #{tpu_custom_call.1} parent=5 // pred_fallthru
      _
    %p1320 = scmp.le.s32.totalorder 2, %s15
    // Predicated region
    $region61: #{tpu_custom_call.1} parent=5 // pred_check
      %p1321 = pneg %p1320
    $region62: #{tpu_custom_call.1} parent=5 // pred_check_branch
      %1323 = sbr.rel (%p1321) target = $region64
    $region63: #{tpu_custom_call.1} parent=5 // pred_region
      %s1324 = ssub.s32 %s15, 2
      // Predicated region
      $region65: #{tpu_custom_call.1} parent=63 // pred_check
        %p1325 = pneg %p271
      $region66: #{tpu_custom_call.1} parent=63 // pred_check_branch
        %1327 = sbr.rel (%p1325) target = $region68
      $region67: #{tpu_custom_call.1} parent=63 // pred_region
        %s1328 = smul.u32 8, %s27
        %p1329 = scmp.lt.s32.totalorder %s26, 1
        %s1330 = scalar_select %p1329, %s26, 1
        %p1331 = scmp.lt.s32.totalorder %s1328, 15
        %s1332 = scalar_select %p1331, %s1328, 15
        %s1333 = smul.addr %s1330, 16
        %s1334 = sadd.s32 %s1332, %s1333
        %s1335 = smul.addr %s1334, 8
        %s1336 = scalar_lea.vmem %s9, %s1335
      $region68: #{tpu_custom_call.1} parent=63 // pred_fallthru
        _
    $region64: #{tpu_custom_call.1} parent=5 // pred_fallthru
      _
  $region6: #{tpu_custom_call.1} parent=0 // loop_footer
    %s19 = sadd.s32 1, %s15
  $region7: #{tpu_custom_call.1} parent=0 // loop_footer_branch
    %14 = sbr.rel target = $region3
  $region8: #{tpu_custom_call.1} parent=0 // loop_exit
    _

// kernel: tpu_custom_call.1
$region0: #{tpu_custom_call.1}
  #allocation0 [shape = 'u32[]', space=smem, size = 0x4, offset = 0x4, fixed_abs, tag = 'smem constant byte address 0x4 - core index']
  #allocation1 [shape = 'u32[72,128]{1,0:T(1,128)}', space=vmem, size = 0x9000, scoped, tag = 'internal scratch']
  %s0 = inlined_call_operand.vmem [shape: f32[2,128,3], index: 0, kind: input, shape index: {}]
  %s1 = inlined_call_operand.vmem [shape: f32[2,3,16], index: 1, kind: input, shape index: {}]
  %s2 = inlined_call_operand.vmem [shape: bf16[2,16,32], index: 2, kind: input, shape index: {}]
  %s3 = inlined_call_operand.vmem [shape: bf16[2,128,16], index: 3, kind: input, shape index: {}]
  %s4 = inlined_call_operand.vmem [shape: bf16[32,64], index: 4, kind: input, shape index: {}]
  %s5 = inlined_call_operand.vmem [shape: bf16[16,64], index: 5, kind: input, shape index: {}]
  %s6 = inlined_call_operand.vmem [shape: f32[1,64], index: 6, kind: input, shape index: {}]
  %s7 = inlined_call_operand.vmem [shape: bf16[64,32], index: 7, kind: input, shape index: {}]
  %s8 = inlined_call_operand.vmem [shape: f32[1,32], index: 8, kind: input, shape index: {}]
  %s9 = inlined_call_operand.vmem [shape: f32[2,128,32], index: 9, kind: output, shape index: {}]
  %s10 = sld [smem:[#allocation0]]
  $region69: #{tpu_custom_call.1} parent=0
    _
  %s12 = ssub.s32 1, %s10
  %s13 = scalar_select 0, %s12, %s10
  loop: start=0, step=1, limit=6
  $region2: #{tpu_custom_call.1} parent=0 // loop_pre_header
    _
  $region3: #{tpu_custom_call.1} parent=0 // loop_header
    %s15 = sphi 0, %s19
    %p16 = scmp.ge.s32.totalorder %s15, 6
    %s22 = sphi 0, %s34
    %s23 = sphi 0, %s30
    %s24 = sphi 0, %s22
    %s25 = sphi 0, %s23
    %s26 = sphi 0, %s24
    %s27 = sphi 0, %s25
    %s39 = sphi 0, %s41
    %s42 = sphi 0, %s39
    %s43 = sphi 0, %s42
    %s59 = sphi 0, %s43
    %s65 = sphi 0, %s67
    %s68 = sphi 0, %s65
    %s69 = sphi 0, %s68
    %s85 = sphi 0, %s69
    %s91 = sphi 0, %s93
    %s94 = sphi 0, %s91
    %s95 = sphi 0, %s94
    %s111 = sphi 0, %s95
    %s119 = sphi 0, %s121
    %s122 = sphi 0, %s119
    %s123 = sphi 0, %s122
    %s139 = sphi 0, %s123
    %s143 = sphi 0, %s143
    %s145 = sphi 0, %s143
    %s146 = sphi 0, %s145
    %s160 = sphi 0, %s146
    %s164 = sphi 0, %s164
    %s166 = sphi 0, %s164
    %s167 = sphi 0, %s166
    %s181 = sphi 0, %s167
    %s185 = sphi 0, %s185
    %s187 = sphi 0, %s185
    %s188 = sphi 0, %s187
    %s202 = sphi 0, %s188
    %s206 = sphi 0, %s206
    %s208 = sphi 0, %s206
    %s209 = sphi 0, %s208
    %s223 = sphi 0, %s209
    %s227 = sphi 0, %s227
    %s229 = sphi 0, %s227
    %s230 = sphi 0, %s229
    %s244 = sphi 0, %s230
    %s252 = sphi 0, %s254
    %s255 = sphi 0, %s252
    %s256 = sphi 0, %s255
    %s272 = sphi 0, %s256
  $region4: #{tpu_custom_call.1} parent=0 // loop_header_branch
    %18 = sbr.rel (%p16) target = $region8
  $region5: #{tpu_custom_call.1} parent=0 // loop_body
    %s20 = ssub.s32 %s15, 1
    %s21 = ssub.s32 %s15, 2
    %s28 = sadd.s32 1, %s23
    %p29 = scmp.ge.s32.totalorder %s28, 2
    %s30 = scalar_select %p29, 0, %s28
    %s31 = sadd.s32 1, %s22
    %s32 = scalar_select %p29, %s31, %s22
    %p33 = scmp.ge.s32.totalorder %s32, 2
    %s34 = scalar_select %p33, 0, %s32
    %s35 = ssub.s32 %s22, %s34
    %s36 = ssub.s32 %s23, %s30
    %s37 = sor.u32 %s35, %s36
    %p38 = scmp.eq.s32.totalorder %s37, 0
    %s40 = sadd.s32 %s39, 1
    %s41 = scalar_select %p38, %s39, %s40
    %p44 = pneg %p38
    %p45 = scmp.eq.s32.totalorder %s15, 3
    %p46 = por %p44, %p45
    %p47 = scmp.ne.s32.totalorder %s39, %s42
    %p48 = scmp.eq.s32.totalorder %s15, 0
    %p49 = por %p47, %p48
    %p50 = scmp.ne.s32.totalorder %s39, %s42
    %p51 = scmp.eq.s32.totalorder %s20, 3
    %p52 = por %p50, %p51
    %p53 = scmp.ne.s32.totalorder %s42, %s43
    %p54 = scmp.eq.s32.totalorder %s20, 0
    %p55 = por %p53, %p54
    %p56 = scmp.ne.s32.totalorder %s42, %s43
    %p57 = scmp.eq.s32.totalorder %s21, 3
    %p58 = por %p56, %p57
    %p60 = scmp.ne.s32.totalorder %s43, %s59
    %p61 = scmp.eq.s32.totalorder %s21, 0
    %p62 = por %p60, %p61
    %s63 = ssub.s32 %s22, %s34
    %p64 = scmp.eq.s32.totalorder %s63, 0
    %s66 = sadd.s32 %s65, 1
    %s67 = scalar_select %p64, %s65, %s66
    %p70 = pneg %p64
    %p71 = scmp.eq.s32.totalorder %s15, 3
    %p72 = por %p70, %p71
    %p73 = scmp.ne.s32.totalorder %s65, %s68
    %p74 = scmp.eq.s32.totalorder %s15, 0
    %p75 = por %p73, %p74
    %p76 = scmp.ne.s32.totalorder %s65, %s68
    %p77 = scmp.eq.s32.totalorder %s20, 3
    %p78 = por %p76, %p77
    %p79 = scmp.ne.s32.totalorder %s68, %s69
    %p80 = scmp.eq.s32.totalorder %s20, 0
    %p81 = por %p79, %p80
    %p82 = scmp.ne.s32.totalorder %s68, %s69
    %p83 = scmp.eq.s32.totalorder %s21, 3
    %p84 = por %p82, %p83
    %p86 = scmp.ne.s32.totalorder %s69, %s85
    %p87 = scmp.eq.s32.totalorder %s21, 0
    %p88 = por %p86, %p87
    %s89 = ssub.s32 %s22, %s34
    %p90 = scmp.eq.s32.totalorder %s89, 0
    %s92 = sadd.s32 %s91, 1
    %s93 = scalar_select %p90, %s91, %s92
    %p96 = pneg %p90
    %p97 = scmp.eq.s32.totalorder %s15, 3
    %p98 = por %p96, %p97
    %p99 = scmp.ne.s32.totalorder %s91, %s94
    %p100 = scmp.eq.s32.totalorder %s15, 0
    %p101 = por %p99, %p100
    %p102 = scmp.ne.s32.totalorder %s91, %s94
    %p103 = scmp.eq.s32.totalorder %s20, 3
    %p104 = por %p102, %p103
    %p105 = scmp.ne.s32.totalorder %s94, %s95
    %p106 = scmp.eq.s32.totalorder %s20, 0
    %p107 = por %p105, %p106
    %p108 = scmp.ne.s32.totalorder %s94, %s95
    %p109 = scmp.eq.s32.totalorder %s21, 3
    %p110 = por %p108, %p109
    %p112 = scmp.ne.s32.totalorder %s95, %s111
    %p113 = scmp.eq.s32.totalorder %s21, 0
    %p114 = por %p112, %p113
    %s115 = ssub.s32 %s22, %s34
    %s116 = ssub.s32 %s23, %s30
    %s117 = sor.u32 %s115, %s116
    %p118 = scmp.eq.s32.totalorder %s117, 0
    %s120 = sadd.s32 %s119, 1
    %s121 = scalar_select %p118, %s119, %s120
    %p124 = pneg %p118
    %p125 = scmp.eq.s32.totalorder %s15, 3
    %p126 = por %p124, %p125
    %p127 = scmp.ne.s32.totalorder %s119, %s122
    %p128 = scmp.eq.s32.totalorder %s15, 0
    %p129 = por %p127, %p128
    %p130 = scmp.ne.s32.totalorder %s119, %s122
    %p131 = scmp.eq.s32.totalorder %s20, 3
    %p132 = por %p130, %p131
    %p133 = scmp.ne.s32.totalorder %s122, %s123
    %p134 = scmp.eq.s32.totalorder %s20, 0
    %p135 = por %p133, %p134
    %p136 = scmp.ne.s32.totalorder %s122, %s123
    %p137 = scmp.eq.s32.totalorder %s21, 3
    %p138 = por %p136, %p137
    %p140 = scmp.ne.s32.totalorder %s123, %s139
    %p141 = scmp.eq.s32.totalorder %s21, 0
    %p142 = por %p140, %p141
    %s144 = sadd.s32 %s143, 1
    %p147 = scmp.eq.s32.totalorder %s15, 3
    %p148 = scmp.ne.s32.totalorder %s143, %s145
    %p149 = scmp.eq.s32.totalorder %s15, 0
    %p150 = por %p148, %p149
    %p151 = scmp.ne.s32.totalorder %s143, %s145
    %p152 = scmp.eq.s32.totalorder %s20, 3
    %p153 = por %p151, %p152
    %p154 = scmp.ne.s32.totalorder %s145, %s146
    %p155 = scmp.eq.s32.totalorder %s20, 0
    %p156 = por %p154, %p155
    %p157 = scmp.ne.s32.totalorder %s145, %s146
    %p158 = scmp.eq.s32.totalorder %s21, 3
    %p159 = por %p157, %p158
    %p161 = scmp.ne.s32.totalorder %s146, %s160
    %p162 = scmp.eq.s32.totalorder %s21, 0
    %p163 = por %p161, %p162
    %s165 = sadd.s32 %s164, 1
    %p168 = scmp.eq.s32.totalorder %s15, 3
    %p169 = scmp.ne.s32.totalorder %s164, %s166
    %p170 = scmp.eq.s32.totalorder %s15, 0
    %p171 = por %p169, %p170
    %p172 = scmp.ne.s32.totalorder %s164, %s166
    %p173 = scmp.eq.s32.totalorder %s20, 3
    %p174 = por %p172, %p173
    %p175 = scmp.ne.s32.totalorder %s166, %s167
    %p176 = scmp.eq.s32.totalorder %s20, 0
    %p177 = por %p175, %p176
    %p178 = scmp.ne.s32.totalorder %s166, %s167
    %p179 = scmp.eq.s32.totalorder %s21, 3
    %p180 = por %p178, %p179
    %p182 = scmp.ne.s32.totalorder %s167, %s181
    %p183 = scmp.eq.s32.totalorder %s21, 0
    %p184 = por %p182, %p183
    %s186 = sadd.s32 %s185, 1
    %p189 = scmp.eq.s32.totalorder %s15, 3
    %p190 = scmp.ne.s32.totalorder %s185, %s187
    %p191 = scmp.eq.s32.totalorder %s15, 0
    %p192 = por %p190, %p191
    %p193 = scmp.ne.s32.totalorder %s185, %s187
    %p194 = scmp.eq.s32.totalorder %s20, 3
    %p195 = por %p193, %p194
    %p196 = scmp.ne.s32.totalorder %s187, %s188
    %p197 = scmp.eq.s32.totalorder %s20, 0
    %p198 = por %p196, %p197
    %p199 = scmp.ne.s32.totalorder %s187, %s188
    %p200 = scmp.eq.s32.totalorder %s21, 3
    %p201 = por %p199, %p200
    %p203 = scmp.ne.s32.totalorder %s188, %s202
    %p204 = scmp.eq.s32.totalorder %s21, 0
    %p205 = por %p203, %p204
    %s207 = sadd.s32 %s206, 1
    %p210 = scmp.eq.s32.totalorder %s15, 3
    %p211 = scmp.ne.s32.totalorder %s206, %s208
    %p212 = scmp.eq.s32.totalorder %s15, 0
    %p213 = por %p211, %p212
    %p214 = scmp.ne.s32.totalorder %s206, %s208
    %p215 = scmp.eq.s32.totalorder %s20, 3
    %p216 = por %p214, %p215
    %p217 = scmp.ne.s32.totalorder %s208, %s209
    %p218 = scmp.eq.s32.totalorder %s20, 0
    %p219 = por %p217, %p218
    %p220 = scmp.ne.s32.totalorder %s208, %s209
    %p221 = scmp.eq.s32.totalorder %s21, 3
    %p222 = por %p220, %p221
    %p224 = scmp.ne.s32.totalorder %s209, %s223
    %p225 = scmp.eq.s32.totalorder %s21, 0
    %p226 = por %p224, %p225
    %s228 = sadd.s32 %s227, 1
    %p231 = scmp.eq.s32.totalorder %s15, 3
    %p232 = scmp.ne.s32.totalorder %s227, %s229
    %p233 = scmp.eq.s32.totalorder %s15, 0
    %p234 = por %p232, %p233
    %p235 = scmp.ne.s32.totalorder %s227, %s229
    %p236 = scmp.eq.s32.totalorder %s20, 3
    %p237 = por %p235, %p236
    %p238 = scmp.ne.s32.totalorder %s229, %s230
    %p239 = scmp.eq.s32.totalorder %s20, 0
    %p240 = por %p238, %p239
    %p241 = scmp.ne.s32.totalorder %s229, %s230
    %p242 = scmp.eq.s32.totalorder %s21, 3
    %p243 = por %p241, %p242
    %p245 = scmp.ne.s32.totalorder %s230, %s244
    %p246 = scmp.eq.s32.totalorder %s21, 0
    %p247 = por %p245, %p246
    %s248 = ssub.s32 %s22, %s34
    %s249 = ssub.s32 %s23, %s30
    %s250 = sor.u32 %s248, %s249
    %p251 = scmp.eq.s32.totalorder %s250, 0
    %s253 = sadd.s32 %s252, 1
    %s254 = scalar_select %p251, %s252, %s253
    %p257 = pneg %p251
    %p258 = scmp.eq.s32.totalorder %s15, 3
    %p259 = por %p257, %p258
    %p260 = scmp.ne.s32.totalorder %s252, %s255
    %p261 = scmp.eq.s32.totalorder %s15, 0
    %p262 = por %p260, %p261
    %p263 = scmp.ne.s32.totalorder %s252, %s255
    %p264 = scmp.eq.s32.totalorder %s20, 3
    %p265 = por %p263, %p264
    %p266 = scmp.ne.s32.totalorder %s255, %s256
    %p267 = scmp.eq.s32.totalorder %s20, 0
    %p268 = por %p266, %p267
    %p269 = scmp.ne.s32.totalorder %s255, %s256
    %p270 = scmp.eq.s32.totalorder %s21, 3
    %p271 = por %p269, %p270
    %p273 = scmp.ne.s32.totalorder %s256, %s272
    %p274 = scmp.eq.s32.totalorder %s21, 0
    %p275 = por %p273, %p274
    %p276 = scmp.le.s32.totalorder 1, %s15
    %p277 = scmp.lt.s32.totalorder %s15, 5
    %p278 = pnand %p276, %p277
    %p279 = pneg %p278
    // Predicated region
    $region9: #{tpu_custom_call.1} parent=5 // pred_check
      _
    $region10: #{tpu_custom_call.1} parent=5 // pred_check_branch
      %281 = sbr.rel (%p278) target = $region12
    $region11: #{tpu_custom_call.1} parent=5 // pred_region
      %s282 = ssub.s32 %s15, 1
      // Predicated region
      $region13: #{tpu_custom_call.1} parent=11 // pred_check
        %p283 = pneg %p156
      $region14: #{tpu_custom_call.1} parent=11 // pred_check_branch
        %285 = sbr.rel (%p283) target = $region16
      $region15: #{tpu_custom_call.1} parent=11 // pred_region
        _
      $region16: #{tpu_custom_call.1} parent=11 // pred_fallthru
        _
      // Predicated region
      $region17: #{tpu_custom_call.1} parent=11 // pred_check
        %p286 = pneg %p177
      $region18: #{tpu_custom_call.1} parent=11 // pred_check_branch
        %288 = sbr.rel (%p286) target = $region20
      $region19: #{tpu_custom_call.1} parent=11 // pred_region
        _
      $region20: #{tpu_custom_call.1} parent=11 // pred_fallthru
        _
      // Predicated region
      $region21: #{tpu_custom_call.1} parent=11 // pred_check
        %p289 = pneg %p198
      $region22: #{tpu_custom_call.1} parent=11 // pred_check_branch
        %291 = sbr.rel (%p289) target = $region24
      $region23: #{tpu_custom_call.1} parent=11 // pred_region
        _
      $region24: #{tpu_custom_call.1} parent=11 // pred_fallthru
        _
      // Predicated region
      $region25: #{tpu_custom_call.1} parent=11 // pred_check
        %p292 = pneg %p219
      $region26: #{tpu_custom_call.1} parent=11 // pred_check_branch
        %294 = sbr.rel (%p292) target = $region28
      $region27: #{tpu_custom_call.1} parent=11 // pred_region
        _
      $region28: #{tpu_custom_call.1} parent=11 // pred_fallthru
        _
      // Predicated region
      $region29: #{tpu_custom_call.1} parent=11 // pred_check
        %p295 = pneg %p240
      $region30: #{tpu_custom_call.1} parent=11 // pred_check_branch
        %297 = sbr.rel (%p295) target = $region32
      $region31: #{tpu_custom_call.1} parent=11 // pred_region
        _
      $region32: #{tpu_custom_call.1} parent=11 // pred_fallthru
        _
    $region12: #{tpu_custom_call.1} parent=5 // pred_fallthru
      _
    %p298 = scmp.lt.s32.totalorder %s15, 4
    // Predicated region
    $region33: #{tpu_custom_call.1} parent=5 // pred_check
      %p299 = pneg %p298
    $region34: #{tpu_custom_call.1} parent=5 // pred_check_branch
      %301 = sbr.rel (%p299) target = $region36
    $region35: #{tpu_custom_call.1} parent=5 // pred_region
      // Predicated region
      $region37: #{tpu_custom_call.1} parent=35 // pred_check
        %p302 = pneg %p49
      $region38: #{tpu_custom_call.1} parent=35 // pred_check_branch
        %304 = sbr.rel (%p302) target = $region40
      $region39: #{tpu_custom_call.1} parent=35 // pred_region
        %s305 = smul.u32 8, %s23
        %p306 = scmp.lt.s32.totalorder %s22, 1
        %s307 = scalar_select %p306, %s22, 1
        %p308 = scmp.lt.s32.totalorder %s305, 15
        %s309 = scalar_select %p308, %s305, 15
        %s310 = smul.addr %s307, 16
        %s311 = sadd.s32 %s309, %s310
        %s312 = smul.addr %s311, 8
        %s313 = scalar_lea.vmem %s0, %s312
        %s314 = smul.u32 8, %s23
      $region40: #{tpu_custom_call.1} parent=35 // pred_fallthru
        _
      // Predicated region
      $region41: #{tpu_custom_call.1} parent=35 // pred_check
        %p315 = pneg %p75
      $region42: #{tpu_custom_call.1} parent=35 // pred_check_branch
        %317 = sbr.rel (%p315) target = $region44
      $region43: #{tpu_custom_call.1} parent=35 // pred_region
        %p318 = scmp.lt.s32.totalorder %s22, 1
        %s319 = scalar_select %p318, %s22, 1
        %s320 = smul.addr %s319, 4
        %s321 = scalar_lea.vmem %s1, %s320
      $region44: #{tpu_custom_call.1} parent=35 // pred_fallthru
        _
      // Predicated region
      $region45: #{tpu_custom_call.1} parent=35 // pred_check
        %p322 = pneg %p101
      $region46: #{tpu_custom_call.1} parent=35 // pred_check_branch
        %324 = sbr.rel (%p322) target = $region48
      $region47: #{tpu_custom_call.1} parent=35 // pred_region
        %p325 = scmp.lt.s32.totalorder %s22, 1
        %s326 = scalar_select %p325, %s22, 1
        %s327 = smul.addr %s326, 2
        %s328 = smul.addr %s327, 4
        %s329 = scalar_lea.vmem %s2, %s328
      $region48: #{tpu_custom_call.1} parent=35 // pred_fallthru
        _
      // Predicated region
      $region49: #{tpu_custom_call.1} parent=35 // pred_check
        %p330 = pneg %p129
      $region50: #{tpu_custom_call.1} parent=35 // pred_check_branch
        %332 = sbr.rel (%p330) target = $region52
      $region51: #{tpu_custom_call.1} parent=35 // pred_region
        %s333 = smul.u32 8, %s23
        %p334 = scmp.lt.s32.totalorder %s22, 1
        %s335 = scalar_select %p334, %s22, 1
        %p336 = scmp.lt.s32.totalorder %s333, 15
        %s337 = scalar_select %p336, %s333, 15
        %s338 = smul.addr %s335, 16
        %s339 = sadd.s32 %s337, %s338
        %s340 = smul.addr %s339, 4
        %s341 = scalar_lea.vmem %s3, %s340
        %s342 = smul.u32 8, %s23
      $region52: #{tpu_custom_call.1} parent=35 // pred_fallthru
        _
    $region36: #{tpu_custom_call.1} parent=5 // pred_fallthru
      _
    %p343 = scmp.le.s32.totalorder 1, %s15
    %p344 = scmp.lt.s32.totalorder %s15, 5
    %p345 = pnand %p343, %p344
    %p346 = pneg %p345
    // Predicated region
    $region53: #{tpu_custom_call.1} parent=5 // pred_check
      _
    $region54: #{tpu_custom_call.1} parent=5 // pred_check_branch
      %348 = sbr.rel (%p345) target = $region56
    $region55: #{tpu_custom_call.1} parent=5 // pred_region
      %s349 = ssub.s32 %s15, 1
      %s350 = smul.u32 8, %s25
      %p351 = scmp.lt.s32.totalorder %s24, 1
      %s352 = scalar_select %p351, %s24, 1
      %p353 = scmp.lt.s32.totalorder %s350, 15
      %s354 = scalar_select %p353, %s350, 15
      %s355 = smul.addr %s352, 16
      %s356 = sadd.s32 %s354, %s355
      %s357 = smul.addr %s356, 8
      %s358 = scalar_lea.vmem %s0, %s357
      %p359 = pneg %p55
      %p360 = pneg %p52
      %p361 = scmp.lt.s32.totalorder %s24, 1
      %s362 = scalar_select %p361, %s24, 1
      %s363 = smul.addr %s362, 4
      %s364 = scalar_lea.vmem %s1, %s363
      %p365 = pneg %p81
      %p366 = pneg %p78
      %p367 = scmp.lt.s32.totalorder %s24, 1
      %s368 = scalar_select %p367, %s24, 1
      %s369 = smul.addr %s368, 2
      %s370 = smul.addr %s369, 4
      %s371 = scalar_lea.vmem %s2, %s370
      %p372 = pneg %p107
      %p373 = pneg %p104
      %s374 = smul.u32 8, %s25
      %p375 = scmp.lt.s32.totalorder %s24, 1
      %s376 = scalar_select %p375, %s24, 1
      %p377 = scmp.lt.s32.totalorder %s374, 15
      %s378 = scalar_select %p377, %s374, 15
      %s379 = smul.addr %s376, 16
      %s380 = sadd.s32 %s378, %s379
      %s381 = smul.addr %s380, 4
      %s382 = scalar_lea.vmem %s3, %s381
      %p383 = pneg %p135
      %p384 = pneg %p132
      %p385 = pneg %p156
      %p386 = pneg %p153
      %p387 = pneg %p177
      %p388 = pneg %p174
      %p389 = pneg %p198
      %p390 = pneg %p195
      %p391 = pneg %p219
      %p392 = pneg %p216
      %p393 = pneg %p240
      %p394 = pneg %p237
      %p395 = pneg %p268
      %p396 = pneg %p265
      %s397 = smul.u32 8, %s25
      %p398 = scmp.lt.s32.totalorder %s24, 1
      %s399 = scalar_select %p398, %s24, 1
      %p400 = scmp.lt.s32.totalorder %s397, 15
      %s401 = scalar_select %p400, %s397, 15
      %s402 = smul.addr %s399, 16
      %s403 = sadd.s32 %s401, %s402
      %s404 = smul.addr %s403, 8
      %s405 = scalar_lea.vmem %s9, %s404
      %s406 = smul.u32 8, %s25
      %p407 = scmp.lt.s32.totalorder %s24, 1
      %s408 = scalar_select %p407, %s24, 1
      %p409 = scmp.lt.s32.totalorder %s406, 15
      %s410 = scalar_select %p409, %s406, 15
      %s411 = smul.addr %s408, 16
      %s412 = sadd.s32 %s410, %s411
      %s413 = smul.addr %s412, 8
      %s414 = scalar_lea.vmem %s0, %s413
      %s415 = smul.u32 8, %s25
      %p416 = scmp.lt.s32.totalorder %s24, 1
      %s417 = scalar_select %p416, %s24, 1
      %s418 = smul.addr %s417, 4
      %s419 = scalar_lea.vmem %s1, %s418
      %p420 = scmp.lt.s32.totalorder %s24, 1
      %s421 = scalar_select %p420, %s24, 1
      %s422 = smul.addr %s421, 2
      %s423 = smul.addr %s422, 4
      %s424 = scalar_lea.vmem %s2, %s423
      %s425 = smul.u32 8, %s25
      %p426 = scmp.lt.s32.totalorder %s24, 1
      %s427 = scalar_select %p426, %s24, 1
      %p428 = scmp.lt.s32.totalorder %s425, 15
      %s429 = scalar_select %p428, %s425, 15
      %s430 = smul.addr %s427, 16
      %s431 = sadd.s32 %s429, %s430
      %s432 = smul.addr %s431, 4
      %s433 = scalar_lea.vmem %s3, %s432
      %s434 = smul.u32 8, %s25
      %s435 = smul.u32 8, %s25
      %p436 = scmp.lt.s32.totalorder %s24, 1
      %s437 = scalar_select %p436, %s24, 1
      %p438 = scmp.lt.s32.totalorder %s435, 15
      %s439 = scalar_select %p438, %s435, 15
      %s440 = smul.addr %s437, 16
      %s441 = sadd.s32 %s439, %s440
      %s442 = smul.addr %s441, 8
      %s443 = scalar_lea.vmem %s9, %s442
      %s444 = smul.u32 8, %s25
      %v446 = vld [vmem:[%s414] sm:$0xff]
      %v447 = vld [vmem:[%s414 + $0x8] sm:$0xff]
      %v448 = vld [vmem:[%s414 + $0x10] sm:$0xff]
      %v449 = vld [vmem:[%s414 + $0x18] sm:$0xff]
      %v450 = vld [vmem:[%s414 + $0x20] sm:$0xff]
      %v451 = vld [vmem:[%s414 + $0x28] sm:$0xff]
      %v452 = vld [vmem:[%s414 + $0x30] sm:$0xff]
      %v453 = vld [vmem:[%s414 + $0x38] sm:$0xff]
      %v454 = vld [vmem:[%s419] sm:$0x7]
      %456 = vset.pattern.permute.xlu0 0
      %457 = vperm.xlu0 %456, %v446
      %v458 = vpop.permute.xlu0 %457
      %461 = vset.pattern.permute.xlu0 0
      %462 = vperm.xlu0 %461, %v447
      %v463 = vpop.permute.xlu0 %462
      %466 = vset.pattern.permute.xlu0 0
      %467 = vperm.xlu0 %466, %v448
      %v468 = vpop.permute.xlu0 %467
      %471 = vset.pattern.permute.xlu0 0
      %472 = vperm.xlu0 %471, %v449
      %v473 = vpop.permute.xlu0 %472
      %476 = vset.pattern.permute.xlu0 0
      %477 = vperm.xlu0 %476, %v450
      %v478 = vpop.permute.xlu0 %477
      %481 = vset.pattern.permute.xlu0 0
      %482 = vperm.xlu0 %481, %v451
      %v483 = vpop.permute.xlu0 %482
      %486 = vset.pattern.permute.xlu0 0
      %487 = vperm.xlu0 %486, %v452
      %v488 = vpop.permute.xlu0 %487
      %491 = vset.pattern.permute.xlu0 0
      %492 = vperm.xlu0 %491, %v453
      %v493 = vpop.permute.xlu0 %492
      %v495 = vperm.slane %v454, 0
      %v496 = vsub.f32 %v458, %v495
      %v497 = vsub.f32 %v463, %v495
      %v498 = vsub.f32 %v468, %v495
      %v499 = vsub.f32 %v473, %v495
      %v500 = vsub.f32 %v478, %v495
      %v501 = vsub.f32 %v483, %v495
      %v502 = vsub.f32 %v488, %v495
      %v503 = vsub.f32 %v493, %v495
      %v504 = vmul.f32 %v496, %v496
      %v505 = vmul.f32 %v497, %v497
      %v506 = vmul.f32 %v498, %v498
      %v507 = vmul.f32 %v499, %v499
      %v508 = vmul.f32 %v500, %v500
      %v509 = vmul.f32 %v501, %v501
      %v510 = vmul.f32 %v502, %v502
      %v511 = vmul.f32 %v503, %v503
      %512 = vset.pattern.permute.xlu0 1
      %513 = vperm.xlu0 %512, %v446
      %v514 = vpop.permute.xlu0 %513
      %516 = vset.pattern.permute.xlu0 1
      %517 = vperm.xlu0 %516, %v447
      %v518 = vpop.permute.xlu0 %517
      %520 = vset.pattern.permute.xlu0 1
      %521 = vperm.xlu0 %520, %v448
      %v522 = vpop.permute.xlu0 %521
      %524 = vset.pattern.permute.xlu0 1
      %525 = vperm.xlu0 %524, %v449
      %v526 = vpop.permute.xlu0 %525
      %528 = vset.pattern.permute.xlu0 1
      %529 = vperm.xlu0 %528, %v450
      %v530 = vpop.permute.xlu0 %529
      %532 = vset.pattern.permute.xlu0 1
      %533 = vperm.xlu0 %532, %v451
      %v534 = vpop.permute.xlu0 %533
      %536 = vset.pattern.permute.xlu0 1
      %537 = vperm.xlu0 %536, %v452
      %v538 = vpop.permute.xlu0 %537
      %540 = vset.pattern.permute.xlu0 1
      %541 = vperm.xlu0 %540, %v453
      %v542 = vpop.permute.xlu0 %541
      %v544 = vperm.slane %v454, 1
      %v545 = vsub.f32 %v514, %v544
      %v546 = vsub.f32 %v518, %v544
      %v547 = vsub.f32 %v522, %v544
      %v548 = vsub.f32 %v526, %v544
      %v549 = vsub.f32 %v530, %v544
      %v550 = vsub.f32 %v534, %v544
      %v551 = vsub.f32 %v538, %v544
      %v552 = vsub.f32 %v542, %v544
      %v553 = vmul.f32 %v545, %v545
      %v554 = vmul.f32 %v546, %v546
      %v555 = vmul.f32 %v547, %v547
      %v556 = vmul.f32 %v548, %v548
      %v557 = vmul.f32 %v549, %v549
      %v558 = vmul.f32 %v550, %v550
      %v559 = vmul.f32 %v551, %v551
      %v560 = vmul.f32 %v552, %v552
      %v561 = vadd.f32 %v504, %v553
      %v562 = vadd.f32 %v505, %v554
      %v563 = vadd.f32 %v506, %v555
      %v564 = vadd.f32 %v507, %v556
      %v565 = vadd.f32 %v508, %v557
      %v566 = vadd.f32 %v509, %v558
      %v567 = vadd.f32 %v510, %v559
      %v568 = vadd.f32 %v511, %v560
      %569 = vset.pattern.permute.xlu0 2
      %570 = vperm.xlu0 %569, %v446
      %v571 = vpop.permute.xlu0 %570
      %573 = vset.pattern.permute.xlu0 2
      %574 = vperm.xlu0 %573, %v447
      %v575 = vpop.permute.xlu0 %574
      %577 = vset.pattern.permute.xlu0 2
      %578 = vperm.xlu0 %577, %v448
      %v579 = vpop.permute.xlu0 %578
      %581 = vset.pattern.permute.xlu0 2
      %582 = vperm.xlu0 %581, %v449
      %v583 = vpop.permute.xlu0 %582
      %585 = vset.pattern.permute.xlu0 2
      %586 = vperm.xlu0 %585, %v450
      %v587 = vpop.permute.xlu0 %586
      %589 = vset.pattern.permute.xlu0 2
      %590 = vperm.xlu0 %589, %v451
      %v591 = vpop.permute.xlu0 %590
      %593 = vset.pattern.permute.xlu0 2
      %594 = vperm.xlu0 %593, %v452
      %v595 = vpop.permute.xlu0 %594
      %597 = vset.pattern.permute.xlu0 2
      %598 = vperm.xlu0 %597, %v453
      %v599 = vpop.permute.xlu0 %598
      %v601 = vperm.slane %v454, 2
      %v602 = vsub.f32 %v571, %v601
      %v603 = vsub.f32 %v575, %v601
      %v604 = vsub.f32 %v579, %v601
      %v605 = vsub.f32 %v583, %v601
      %v606 = vsub.f32 %v587, %v601
      %v607 = vsub.f32 %v591, %v601
      %v608 = vsub.f32 %v595, %v601
      %v609 = vsub.f32 %v599, %v601
      %v610 = vmul.f32 %v602, %v602
      %v611 = vmul.f32 %v603, %v603
      %v612 = vmul.f32 %v604, %v604
      %v613 = vmul.f32 %v605, %v605
      %v614 = vmul.f32 %v606, %v606
      %v615 = vmul.f32 %v607, %v607
      %v616 = vmul.f32 %v608, %v608
      %v617 = vmul.f32 %v609, %v609
      %v618 = vadd.f32 %v561, %v610
      %v619 = vadd.f32 %v562, %v611
      %v620 = vadd.f32 %v563, %v612
      %v621 = vadd.f32 %v564, %v613
      %v622 = vadd.f32 %v565, %v614
      %v623 = vadd.f32 %v566, %v615
      %v624 = vadd.f32 %v567, %v616
      %v625 = vadd.f32 %v568, %v617
      %v626 = vlaneseq
      %v627 = vand.u32 %v626, 127
      %v636 = vshra.s32 %v618, 4
      %v637 = vshra.s32 %v619, 4
      %v638 = vshra.s32 %v620, 4
      %v639 = vshra.s32 %v621, 4
      %v640 = vshra.s32 %v622, 4
      %v641 = vshra.s32 %v623, 4
      %v642 = vshra.s32 %v624, 4
      %v643 = vshra.s32 %v625, 4
      %v644 = vshll.u32 %v636, 4
      %v645 = vshll.u32 %v637, 4
      %v646 = vshll.u32 %v638, 4
      %v647 = vshll.u32 %v639, 4
      %v648 = vshll.u32 %v640, 4
      %v649 = vshll.u32 %v641, 4
      %v650 = vshll.u32 %v642, 4
      %v651 = vshll.u32 %v643, 4
      %v652 = vor.u32 %v644, %v627
      %v653 = vor.u32 %v645, %v627
      %v654 = vor.u32 %v646, %v627
      %v655 = vor.u32 %v647, %v627
      %v656 = vor.u32 %v648, %v627
      %v657 = vor.u32 %v649, %v627
      %v658 = vor.u32 %v650, %v627
      %v659 = vor.u32 %v651, %v627
      %vm668 = vcmask 130048
      %v669 = vsel %vm668, %v652, inf
      %670 = vmin.xlane.f32.xlu0 %v669
      %v671 = vpop.xlane.xlu0 %670
      %v672 = vsel %vm668, %v653, inf
      %673 = vmin.xlane.f32.xlu0 %v672
      %v674 = vpop.xlane.xlu0 %673
      %v675 = vsel %vm668, %v654, inf
      %676 = vmin.xlane.f32.xlu0 %v675
      %v677 = vpop.xlane.xlu0 %676
      %v678 = vsel %vm668, %v655, inf
      %679 = vmin.xlane.f32.xlu0 %v678
      %v680 = vpop.xlane.xlu0 %679
      %v681 = vsel %vm668, %v656, inf
      %682 = vmin.xlane.f32.xlu0 %v681
      %v683 = vpop.xlane.xlu0 %682
      %v684 = vsel %vm668, %v657, inf
      %685 = vmin.xlane.f32.xlu0 %v684
      %v686 = vpop.xlane.xlu0 %685
      %v687 = vsel %vm668, %v658, inf
      %688 = vmin.xlane.f32.xlu0 %v687
      %v689 = vpop.xlane.xlu0 %688
      %v690 = vsel %vm668, %v659, inf
      %691 = vmin.xlane.f32.xlu0 %v690
      %v692 = vpop.xlane.xlu0 %691
      %v701 = vand.u32 %v671, 15
      %v702 = vand.u32 %v674, 15
      %v703 = vand.u32 %v677, 15
      %v704 = vand.u32 %v680, 15
      %v705 = vand.u32 %v683, 15
      %v706 = vand.u32 %v686, 15
      %v707 = vand.u32 %v689, 15
      %v708 = vand.u32 %v692, 15
      %v709 = vsub.s32 %v671, %v701
      %v710 = vsub.s32 %v674, %v702
      %v711 = vsub.s32 %v677, %v703
      %v712 = vsub.s32 %v680, %v704
      %v713 = vsub.s32 %v683, %v705
      %v714 = vsub.s32 %v686, %v706
      %v715 = vsub.s32 %v689, %v707
      %v716 = vsub.s32 %v692, %v708
      %vm725 = vcmp.eq.s32.totalorder %v627, %v701
      %vm726 = vcmp.eq.s32.totalorder %v627, %v702
      %vm727 = vcmp.eq.s32.totalorder %v627, %v703
      %vm728 = vcmp.eq.s32.totalorder %v627, %v704
      %vm729 = vcmp.eq.s32.totalorder %v627, %v705
      %vm730 = vcmp.eq.s32.totalorder %v627, %v706
      %vm731 = vcmp.eq.s32.totalorder %v627, %v707
      %vm732 = vcmp.eq.s32.totalorder %v627, %v708
      %v733 = vadd.f32 %v709, 1e-08
      %v734 = vadd.f32 %v710, 1e-08
      %v735 = vadd.f32 %v711, 1e-08
      %v736 = vadd.f32 %v712, 1e-08
      %v737 = vadd.f32 %v713, 1e-08
      %v738 = vadd.f32 %v714, 1e-08
      %v739 = vadd.f32 %v715, 1e-08
      %v740 = vadd.f32 %v716, 1e-08
      %v741 = vrcp.pop %v733
      %v742 = vrcp.pop %v734
      %v743 = vrcp.pop %v735
      %v744 = vrcp.pop %v736
      %v745 = vrcp.pop %v737
      %v746 = vrcp.pop %v738
      %v747 = vrcp.pop %v739
      %v748 = vrcp.pop %v740
      %v749 = vsel %vm725, %v741, 0.0
      %v750 = vsel %vm726, %v742, 0.0
      %v751 = vsel %vm727, %v743, 0.0
      %v752 = vsel %vm728, %v744, 0.0
      %v753 = vsel %vm729, %v745, 0.0
      %v754 = vsel %vm730, %v746, 0.0
      %v755 = vsel %vm731, %v747, 0.0
      %v756 = vsel %vm732, %v748, 0.0
      %v757 = vsel %vm725, inf, %v652
      %v758 = vsel %vm726, inf, %v653
      %v759 = vsel %vm727, inf, %v654
      %v760 = vsel %vm728, inf, %v655
      %v761 = vsel %vm729, inf, %v656
      %v762 = vsel %vm730, inf, %v657
      %v763 = vsel %vm731, inf, %v658
      %v764 = vsel %vm732, inf, %v659
      %v765 = vsel %vm668, %v757, inf
      %766 = vmin.xlane.f32.xlu0 %v765
      %v767 = vpop.xlane.xlu0 %766
      %v768 = vsel %vm668, %v758, inf
      %769 = vmin.xlane.f32.xlu0 %v768
      %v770 = vpop.xlane.xlu0 %769
      %v771 = vsel %vm668, %v759, inf
      %772 = vmin.xlane.f32.xlu0 %v771
      %v773 = vpop.xlane.xlu0 %772
      %v774 = vsel %vm668, %v760, inf
      %775 = vmin.xlane.f32.xlu0 %v774
      %v776 = vpop.xlane.xlu0 %775
      %v777 = vsel %vm668, %v761, inf
      %778 = vmin.xlane.f32.xlu0 %v777
      %v779 = vpop.xlane.xlu0 %778
      %v780 = vsel %vm668, %v762, inf
      %781 = vmin.xlane.f32.xlu0 %v780
      %v782 = vpop.xlane.xlu0 %781
      %v783 = vsel %vm668, %v763, inf
      %784 = vmin.xlane.f32.xlu0 %v783
      %v785 = vpop.xlane.xlu0 %784
      %v786 = vsel %vm668, %v764, inf
      %787 = vmin.xlane.f32.xlu0 %v786
      %v788 = vpop.xlane.xlu0 %787
      %v797 = vand.u32 %v767, 15
      %v798 = vand.u32 %v770, 15
      %v799 = vand.u32 %v773, 15
      %v800 = vand.u32 %v776, 15
      %v801 = vand.u32 %v779, 15
      %v802 = vand.u32 %v782, 15
      %v803 = vand.u32 %v785, 15
      %v804 = vand.u32 %v788, 15
      %v805 = vsub.s32 %v767, %v797
      %v806 = vsub.s32 %v770, %v798
      %v807 = vsub.s32 %v773, %v799
      %v808 = vsub.s32 %v776, %v800
      %v809 = vsub.s32 %v779, %v801
      %v810 = vsub.s32 %v782, %v802
      %v811 = vsub.s32 %v785, %v803
      %v812 = vsub.s32 %v788, %v804
      %vm821 = vcmp.eq.s32.totalorder %v627, %v797
      %vm822 = vcmp.eq.s32.totalorder %v627, %v798
      %vm823 = vcmp.eq.s32.totalorder %v627, %v799
      %vm824 = vcmp.eq.s32.totalorder %v627, %v800
      %vm825 = vcmp.eq.s32.totalorder %v627, %v801
      %vm826 = vcmp.eq.s32.totalorder %v627, %v802
      %vm827 = vcmp.eq.s32.totalorder %v627, %v803
      %vm828 = vcmp.eq.s32.totalorder %v627, %v804
      %v829 = vadd.f32 %v805, 1e-08
      %v830 = vadd.f32 %v806, 1e-08
      %v831 = vadd.f32 %v807, 1e-08
      %v832 = vadd.f32 %v808, 1e-08
      %v833 = vadd.f32 %v809, 1e-08
      %v834 = vadd.f32 %v810, 1e-08
      %v835 = vadd.f32 %v811, 1e-08
      %v836 = vadd.f32 %v812, 1e-08
      %v837 = vrcp.pop %v829
      %v838 = vrcp.pop %v830
      %v839 = vrcp.pop %v831
      %v840 = vrcp.pop %v832
      %v841 = vrcp.pop %v833
      %v842 = vrcp.pop %v834
      %v843 = vrcp.pop %v835
      %v844 = vrcp.pop %v836
      %v845 = vsel %vm821, %v837, 0.0
      %v846 = vsel %vm822, %v838, 0.0
      %v847 = vsel %vm823, %v839, 0.0
      %v848 = vsel %vm824, %v840, 0.0
      %v849 = vsel %vm825, %v841, 0.0
      %v850 = vsel %vm826, %v842, 0.0
      %v851 = vsel %vm827, %v843, 0.0
      %v852 = vsel %vm828, %v844, 0.0
      %v853 = vadd.f32 %v749, %v845
      %v854 = vadd.f32 %v750, %v846
      %v855 = vadd.f32 %v751, %v847
      %v856 = vadd.f32 %v752, %v848
      %v857 = vadd.f32 %v753, %v849
      %v858 = vadd.f32 %v754, %v850
      %v859 = vadd.f32 %v755, %v851
      %v860 = vadd.f32 %v756, %v852
      %v861 = vadd.f32 %v741, %v837
      %v862 = vadd.f32 %v742, %v838
      %v863 = vadd.f32 %v743, %v839
      %v864 = vadd.f32 %v744, %v840
      %v865 = vadd.f32 %v745, %v841
      %v866 = vadd.f32 %v746, %v842
      %v867 = vadd.f32 %v747, %v843
      %v868 = vadd.f32 %v748, %v844
      %v869 = vsel %vm821, inf, %v757
      %v870 = vsel %vm822, inf, %v758
      %v871 = vsel %vm823, inf, %v759
      %v872 = vsel %vm824, inf, %v760
      %v873 = vsel %vm825, inf, %v761
      %v874 = vsel %vm826, inf, %v762
      %v875 = vsel %vm827, inf, %v763
      %v876 = vsel %vm828, inf, %v764
      %v877 = vsel %vm668, %v869, inf
      %878 = vmin.xlane.f32.xlu0 %v877
      %v879 = vpop.xlane.xlu0 %878
      %v880 = vsel %vm668, %v870, inf
      %881 = vmin.xlane.f32.xlu0 %v880
      %v882 = vpop.xlane.xlu0 %881
      %v883 = vsel %vm668, %v871, inf
      %884 = vmin.xlane.f32.xlu0 %v883
      %v885 = vpop.xlane.xlu0 %884
      %v886 = vsel %vm668, %v872, inf
      %887 = vmin.xlane.f32.xlu0 %v886
      %v888 = vpop.xlane.xlu0 %887
      %v889 = vsel %vm668, %v873, inf
      %890 = vmin.xlane.f32.xlu0 %v889
      %v891 = vpop.xlane.xlu0 %890
      %v892 = vsel %vm668, %v874, inf
      %893 = vmin.xlane.f32.xlu0 %v892
      %v894 = vpop.xlane.xlu0 %893
      %v895 = vsel %vm668, %v875, inf
      %896 = vmin.xlane.f32.xlu0 %v895
      %v897 = vpop.xlane.xlu0 %896
      %v898 = vsel %vm668, %v876, inf
      %899 = vmin.xlane.f32.xlu0 %v898
      %v900 = vpop.xlane.xlu0 %899
      %v909 = vand.u32 %v879, 15
      %v910 = vand.u32 %v882, 15
      %v911 = vand.u32 %v885, 15
      %v912 = vand.u32 %v888, 15
      %v913 = vand.u32 %v891, 15
      %v914 = vand.u32 %v894, 15
      %v915 = vand.u32 %v897, 15
      %v916 = vand.u32 %v900, 15
      %v917 = vsub.s32 %v879, %v909
      %v918 = vsub.s32 %v882, %v910
      %v919 = vsub.s32 %v885, %v911
      %v920 = vsub.s32 %v888, %v912
      %v921 = vsub.s32 %v891, %v913
      %v922 = vsub.s32 %v894, %v914
      %v923 = vsub.s32 %v897, %v915
      %v924 = vsub.s32 %v900, %v916
      %vm933 = vcmp.eq.s32.totalorder %v627, %v909
      %vm934 = vcmp.eq.s32.totalorder %v627, %v910
      %vm935 = vcmp.eq.s32.totalorder %v627, %v911
      %vm936 = vcmp.eq.s32.totalorder %v627, %v912
      %vm937 = vcmp.eq.s32.totalorder %v627, %v913
      %vm938 = vcmp.eq.s32.totalorder %v627, %v914
      %vm939 = vcmp.eq.s32.totalorder %v627, %v915
      %vm940 = vcmp.eq.s32.totalorder %v627, %v916
      %v941 = vadd.f32 %v917, 1e-08
      %v942 = vadd.f32 %v918, 1e-08
      %v943 = vadd.f32 %v919, 1e-08
      %v944 = vadd.f32 %v920, 1e-08
      %v945 = vadd.f32 %v921, 1e-08
      %v946 = vadd.f32 %v922, 1e-08
      %v947 = vadd.f32 %v923, 1e-08
      %v948 = vadd.f32 %v924, 1e-08
      %v949 = vrcp.pop %v941
      %v950 = vrcp.pop %v942
      %v951 = vrcp.pop %v943
      %v952 = vrcp.pop %v944
      %v953 = vrcp.pop %v945
      %v954 = vrcp.pop %v946
      %v955 = vrcp.pop %v947
      %v956 = vrcp.pop %v948
      %v957 = vsel %vm933, %v949, 0.0
      %v958 = vsel %vm934, %v950, 0.0
      %v959 = vsel %vm935, %v951, 0.0
      %v960 = vsel %vm936, %v952, 0.0
      %v961 = vsel %vm937, %v953, 0.0
      %v962 = vsel %vm938, %v954, 0.0
      %v963 = vsel %vm939, %v955, 0.0
      %v964 = vsel %vm940, %v956, 0.0
      %v965 = vadd.f32 %v853, %v957
      %v966 = vadd.f32 %v854, %v958
      %v967 = vadd.f32 %v855, %v959
      %v968 = vadd.f32 %v856, %v960
      %v969 = vadd.f32 %v857, %v961
      %v970 = vadd.f32 %v858, %v962
      %v971 = vadd.f32 %v859, %v963
      %v972 = vadd.f32 %v860, %v964
      %v973 = vadd.f32 %v861, %v949
      %v974 = vadd.f32 %v862, %v950
      %v975 = vadd.f32 %v863, %v951
      %v976 = vadd.f32 %v864, %v952
      %v977 = vadd.f32 %v865, %v953
      %v978 = vadd.f32 %v866, %v954
      %v979 = vadd.f32 %v867, %v955
      %v980 = vadd.f32 %v868, %v956
      %v981 = vrcp.pop %v973
      %v982 = vrcp.pop %v974
      %v983 = vrcp.pop %v975
      %v984 = vrcp.pop %v976
      %v985 = vrcp.pop %v977
      %v986 = vrcp.pop %v978
      %v987 = vrcp.pop %v979
      %v988 = vrcp.pop %v980
      %v989 = vmul.f32 %v965, %v981
      %v990 = vmul.f32 %v966, %v982
      %v991 = vmul.f32 %v967, %v983
      %v992 = vmul.f32 %v968, %v984
      %v993 = vmul.f32 %v969, %v985
      %v994 = vmul.f32 %v970, %v986
      %v995 = vmul.f32 %v971, %v987
      %v996 = vmul.f32 %v972, %v988
      %v997 = vpack.c.bf16 %v990, %v989
      %v998 = vpack.c.bf16 %v992, %v991
      %v999 = vpack.c.bf16 %v994, %v993
      %v1000 = vpack.c.bf16 %v996, %v995
      %v1001 = vld [vmem:[%s424] sm:$0xf]
      %v1002 = vld [vmem:[%s424 + $0x4] sm:$0xf]
      %v1005 = vunpack.c.l.b16 %v1001
      %v1006 = vunpack.c.l.b16 %v1002
      %v1007 = vpack.c.b16 %v1006, %v1005
      %v1010 = vsel %vm668, %v997, 0
      %v1013 = vsel %vm668, %v998, 0
      %v1016 = vsel %vm668, %v999, 0
      %v1019 = vsel %vm668, %v1000, 0
      %1021 = vmatpush.bf16.msra.mxu0 0
      %1022 = vmatpush.bf16.msra.mxu0 0
      %1023 = vmatpush.bf16.msra.mxu0 0
      %1024 = vmatpush.bf16.msra.mxu0 0
      %1025 = vmatpush.bf16.msra.mxu0 0
      %1026 = vmatpush.bf16.msra.mxu0 0
      %1027 = vmatpush.bf16.msra.mxu0 0
      %1028 = vmatpush.bf16.msra.mxu0 %v1007
      %1029 = vmatmul.bf16.gmra.mxu0 %v1010
      %v1030 = vpop.f32.mrf.mxu0
      %v1031 = vadd.f32 0.0, %v1030
      %v1032 = vpop.f32.mrf.mxu0
      %v1033 = vadd.f32 0.0, %v1032
      %1034 = vmatmul.bf16.gmra.mxu0 %v1013
      %v1035 = vpop.f32.mrf.mxu0
      %v1036 = vadd.f32 0.0, %v1035
      %v1037 = vpop.f32.mrf.mxu0
      %v1038 = vadd.f32 0.0, %v1037
      %1039 = vmatmul.bf16.gmra.mxu0 %v1016
      %v1040 = vpop.f32.mrf.mxu0
      %v1041 = vadd.f32 0.0, %v1040
      %v1042 = vpop.f32.mrf.mxu0
      %v1043 = vadd.f32 0.0, %v1042
      %1044 = vmatmul.bf16.gmra.mxu0 %v1019
      %v1045 = vpop.f32.mrf.mxu0
      %v1046 = vadd.f32 0.0, %v1045
      %v1047 = vpop.f32.mrf.mxu0
      %v1048 = vadd.f32 0.0, %v1047
      %1049 = vdwg.mxu0
      %v1050 = vpack.c.bf16 %v1033, %v1031
      %v1051 = vpack.c.bf16 %v1038, %v1036
      %v1052 = vpack.c.bf16 %v1043, %v1041
      %v1053 = vpack.c.bf16 %v1048, %v1046
      %v1054 = vld [vmem:[%s4] sm:$0xf]
      %v1055 = vld [vmem:[%s4 + $0x4] sm:$0xf]
      %v1056 = vld [vmem:[%s4 + $0x8] sm:$0xf]
      %v1057 = vld [vmem:[%s4 + $0xc] sm:$0xf]
      %v1058 = vld [vmem:[%s433] sm:$0xf]
      %v1059 = vld [vmem:[%s433 + $0x4] sm:$0xf]
      %v1060 = vld [vmem:[%s433 + $0x8] sm:$0xf]
      %v1061 = vld [vmem:[%s433 + $0xc] sm:$0xf]
      %v1062 = vld [vmem:[%s433 + $0x10] sm:$0xf]
      %v1063 = vld [vmem:[%s433 + $0x14] sm:$0xf]
      %v1064 = vld [vmem:[%s433 + $0x18] sm:$0xf]
      %v1065 = vld [vmem:[%s433 + $0x1c] sm:$0xf]
      %v1066 = vld [vmem:[%s5] sm:$0xf]
      %v1067 = vld [vmem:[%s5 + $0x4] sm:$0xf]
      %v1076 = vunpack.c.l.b16 %v1058
      %v1077 = vunpack.c.l.b16 %v1059
      %v1078 = vunpack.c.l.b16 %v1060
      %v1079 = vunpack.c.l.b16 %v1061
      %v1080 = vunpack.c.l.b16 %v1062
      %v1081 = vunpack.c.l.b16 %v1063
      %v1082 = vunpack.c.l.b16 %v1064
      %v1083 = vunpack.c.l.b16 %v1065
      %v1084 = vpack.c.b16 %v1077, %v1076
      %v1085 = vpack.c.b16 %v1079, %v1078
      %v1086 = vpack.c.b16 %v1081, %v1080
      %v1087 = vpack.c.b16 %v1083, %v1082
      %v1090 = vunpack.c.l.b16 %v1066
      %v1091 = vunpack.c.l.b16 %v1067
      %v1092 = vpack.c.b16 %v1091, %v1090
      %v1095 = vsel %vm668, %v1084, 0
      %v1098 = vsel %vm668, %v1085, 0
      %v1101 = vsel %vm668, %v1086, 0
      %v1104 = vsel %vm668, %v1087, 0
      %1106 = vmatpush.bf16.msra.mxu0 0
      %1107 = vmatpush.bf16.msra.mxu0 0
      %1108 = vmatpush.bf16.msra.mxu0 0
      %1109 = vmatpush.bf16.msra.mxu0 0
      %1110 = vmatpush.bf16.msra.mxu0 0
      %1111 = vmatpush.bf16.msra.mxu0 0
      %1112 = vmatpush.bf16.msra.mxu0 0
      %1113 = vmatpush.bf16.msra.mxu0 %v1092
      %1114 = vmatmul.bf16.gmra.mxu0 %v1095
      %v1115 = vpop.f32.mrf.mxu0
      %v1116 = vadd.f32 0.0, %v1115
      %v1117 = vpop.f32.mrf.mxu0
      %v1118 = vadd.f32 0.0, %v1117
      %1119 = vmatmul.bf16.gmra.mxu0 %v1098
      %v1120 = vpop.f32.mrf.mxu0
      %v1121 = vadd.f32 0.0, %v1120
      %v1122 = vpop.f32.mrf.mxu0
      %v1123 = vadd.f32 0.0, %v1122
      %1124 = vmatmul.bf16.gmra.mxu0 %v1101
      %v1125 = vpop.f32.mrf.mxu0
      %v1126 = vadd.f32 0.0, %v1125
      %v1127 = vpop.f32.mrf.mxu0
      %v1128 = vadd.f32 0.0, %v1127
      %1129 = vmatmul.bf16.gmra.mxu0 %v1104
      %v1130 = vpop.f32.mrf.mxu0
      %v1131 = vadd.f32 0.0, %v1130
      %v1132 = vpop.f32.mrf.mxu0
      %v1133 = vadd.f32 0.0, %v1132
      %1134 = vdwg.mxu0
      %v1139 = vunpack.c.l.b16 %v1054
      %v1140 = vunpack.c.l.b16 %v1055
      %v1141 = vunpack.c.l.b16 %v1056
      %v1142 = vunpack.c.l.b16 %v1057
      %v1143 = vpack.c.b16 %v1140, %v1139
      %v1144 = vpack.c.b16 %v1142, %v1141
      %vm1147 = vcmask 261120
      %v1149 = vsel %vm1147, %v1050, 0
      %v1152 = vsel %vm1147, %v1051, 0
      %v1155 = vsel %vm1147, %v1052, 0
      %v1158 = vsel %vm1147, %v1053, 0
      %1160 = vmatpush.bf16.msra.mxu0 0
      %1161 = vmatpush.bf16.msra.mxu0 0
      %1162 = vmatpush.bf16.msra.mxu0 0
      %1163 = vmatpush.bf16.msra.mxu0 0
      %1164 = vmatpush.bf16.msra.mxu0 0
      %1165 = vmatpush.bf16.msra.mxu0 0
      %1166 = vmatpush.bf16.msra.mxu0 %v1144
      %1167 = vmatpush.bf16.msra.mxu0 %v1143
      %1168 = vmatmul.bf16.gmra.mxu0 %v1149
      %v1169 = vpop.f32.mrf.mxu0
      %v1170 = vadd.f32 %v1116, %v1169
      %v1171 = vpop.f32.mrf.mxu0
      %v1172 = vadd.f32 %v1118, %v1171
      %1173 = vmatmul.bf16.gmra.mxu0 %v1152
      %v1174 = vpop.f32.mrf.mxu0
      %v1175 = vadd.f32 %v1121, %v1174
      %v1176 = vpop.f32.mrf.mxu0
      %v1177 = vadd.f32 %v1123, %v1176
      %1178 = vmatmul.bf16.gmra.mxu0 %v1155
      %v1179 = vpop.f32.mrf.mxu0
      %v1180 = vadd.f32 %v1126, %v1179
      %v1181 = vpop.f32.mrf.mxu0
      %v1182 = vadd.f32 %v1128, %v1181
      %1183 = vmatmul.bf16.gmra.mxu0 %v1158
      %v1184 = vpop.f32.mrf.mxu0
      %v1185 = vadd.f32 %v1131, %v1184
      %v1186 = vpop.f32.mrf.mxu0
      %v1187 = vadd.f32 %v1133, %v1186
      %1188 = vdwg.mxu0
      %v1189 = vld [vmem:[%s6] sm:$0x1]
      %v1191 = vperm.slane %v1189, 0
      %v1193 = vadd.f32 %v1170, %v1191
      %v1194 = vadd.f32 %v1172, %v1191
      %v1195 = vadd.f32 %v1175, %v1191
      %v1196 = vadd.f32 %v1177, %v1191
      %v1197 = vadd.f32 %v1180, %v1191
      %v1198 = vadd.f32 %v1182, %v1191
      %v1199 = vadd.f32 %v1185, %v1191
      %v1200 = vadd.f32 %v1187, %v1191
      %v1201 = vmax.f32 %v1193, 0.0
      %v1202 = vmax.f32 %v1194, 0.0
      %v1203 = vmax.f32 %v1195, 0.0
      %v1204 = vmax.f32 %v1196, 0.0
      %v1205 = vmax.f32 %v1197, 0.0
      %v1206 = vmax.f32 %v1198, 0.0
      %v1207 = vmax.f32 %v1199, 0.0
      %v1208 = vmax.f32 %v1200, 0.0
      %v1209 = vpack.c.bf16 %v1202, %v1201
      %v1210 = vpack.c.bf16 %v1204, %v1203
      %v1211 = vpack.c.bf16 %v1206, %v1205
      %v1212 = vpack.c.bf16 %v1208, %v1207
      %v1213 = vld [vmem:[%s7] sm:$0xf]
      %v1214 = vld [vmem:[%s7 + $0x4] sm:$0xf]
      %v1215 = vld [vmem:[%s7 + $0x8] sm:$0xf]
      %v1216 = vld [vmem:[%s7 + $0xc] sm:$0xf]
      %v1217 = vld [vmem:[%s7 + $0x10] sm:$0xf]
      %v1218 = vld [vmem:[%s7 + $0x14] sm:$0xf]
      %v1219 = vld [vmem:[%s7 + $0x18] sm:$0xf]
      %v1220 = vld [vmem:[%s7 + $0x1c] sm:$0xf]
      %v1221 = vld [vmem:[%s8] sm:$0x1]
      %v1223 = vperm.slane %v1221, 0
      %v1233 = vunpack.c.l.b16 %v1213
      %v1234 = vunpack.c.l.b16 %v1214
      %v1235 = vunpack.c.l.b16 %v1215
      %v1236 = vunpack.c.l.b16 %v1216
      %v1237 = vunpack.c.l.b16 %v1217
      %v1238 = vunpack.c.l.b16 %v1218
      %v1239 = vunpack.c.l.b16 %v1219
      %v1240 = vunpack.c.l.b16 %v1220
      %v1241 = vpack.c.b16 %v1234, %v1233
      %v1242 = vpack.c.b16 %v1236, %v1235
      %v1243 = vpack.c.b16 %v1238, %v1237
      %v1244 = vpack.c.b16 %v1240, %v1239
      %vm1249 = vcmask 523264
      %v1251 = vsel %vm1249, %v1209, 0
      %v1254 = vsel %vm1249, %v1210, 0
      %v1257 = vsel %vm1249, %v1211, 0
      %v1260 = vsel %vm1249, %v1212, 0
      %1262 = vmatpush.bf16.msra.mxu0 0
      %1263 = vmatpush.bf16.msra.mxu0 0
      %1264 = vmatpush.bf16.msra.mxu0 0
      %1265 = vmatpush.bf16.msra.mxu0 0
      %1266 = vmatpush.bf16.msra.mxu0 %v1244
      %1267 = vmatpush.bf16.msra.mxu0 %v1243
      %1268 = vmatpush.bf16.msra.mxu0 %v1242
      %1269 = vmatpush.bf16.msra.mxu0 %v1241
      %1270 = vmatmul.bf16.gmra.mxu0 %v1251
      %v1271 = vpop.f32.mrf.mxu0
      %v1272 = vadd.f32 %v1223, %v1271
      %v1273 = vpop.f32.mrf.mxu0
      %v1274 = vadd.f32 %v1223, %v1273
      %1275 = vmatmul.bf16.gmra.mxu0 %v1254
      %v1276 = vpop.f32.mrf.mxu0
      %v1277 = vadd.f32 %v1223, %v1276
      %v1278 = vpop.f32.mrf.mxu0
      %v1279 = vadd.f32 %v1223, %v1278
      %1280 = vmatmul.bf16.gmra.mxu0 %v1257
      %v1281 = vpop.f32.mrf.mxu0
      %v1282 = vadd.f32 %v1223, %v1281
      %v1283 = vpop.f32.mrf.mxu0
      %v1284 = vadd.f32 %v1223, %v1283
      %1285 = vmatmul.bf16.gmra.mxu0 %v1260
      %v1286 = vpop.f32.mrf.mxu0
      %v1287 = vadd.f32 %v1223, %v1286
      %v1288 = vpop.f32.mrf.mxu0
      %v1289 = vadd.f32 %v1223, %v1288
      %1290 = vdwg.mxu0
      %v1291 = vmax.f32 %v1272, 0.0
      %v1292 = vmax.f32 %v1274, 0.0
      %v1293 = vmax.f32 %v1277, 0.0
      %v1294 = vmax.f32 %v1279, 0.0
      %v1295 = vmax.f32 %v1282, 0.0
      %v1296 = vmax.f32 %v1284, 0.0
      %v1297 = vmax.f32 %v1287, 0.0
      %v1298 = vmax.f32 %v1289, 0.0
      %1299 = vst.msk [vmem:[%s443] sm:$0xff] %vm1147, %v1291
      %1300 = vst.msk [vmem:[%s443 + $0x8] sm:$0xff] %vm1147, %v1292
      %1301 = vst.msk [vmem:[%s443 + $0x10] sm:$0xff] %vm1147, %v1293
      %1302 = vst.msk [vmem:[%s443 + $0x18] sm:$0xff] %vm1147, %v1294
      %1303 = vst.msk [vmem:[%s443 + $0x20] sm:$0xff] %vm1147, %v1295
      %1304 = vst.msk [vmem:[%s443 + $0x28] sm:$0xff] %vm1147, %v1296
      %1305 = vst.msk [vmem:[%s443 + $0x30] sm:$0xff] %vm1147, %v1297
      %1306 = vst.msk [vmem:[%s443 + $0x38] sm:$0xff] %vm1147, %v1298
      %s1307 = smul.u32 8, %s25
      %p1308 = scmp.lt.s32.totalorder %s24, 1
      %s1309 = scalar_select %p1308, %s24, 1
      %p1310 = scmp.lt.s32.totalorder %s1307, 15
      %s1311 = scalar_select %p1310, %s1307, 15
      %s1312 = smul.addr %s1309, 16
      %s1313 = sadd.s32 %s1311, %s1312
      %s1314 = smul.addr %s1313, 8
      %s1315 = scalar_lea.vmem %s9, %s1314
      // Predicated region
      $region57: #{tpu_custom_call.1} parent=55 // pred_check
        %p1316 = pneg %p265
      $region58: #{tpu_custom_call.1} parent=55 // pred_check_branch
        %1318 = sbr.rel (%p1316) target = $region60
      $region59: #{tpu_custom_call.1} parent=55 // pred_region
        %s1319 = smul.u32 8, %s25
      $region60: #{tpu_custom_call.1} parent=55 // pred_fallthru
        _
    $region56: #{tpu_custom_call.1} parent=5 // pred_fallthru
      _
    %p1320 = scmp.le.s32.totalorder 2, %s15
    // Predicated region
    $region61: #{tpu_custom_call.1} parent=5 // pred_check
      %p1321 = pneg %p1320
    $region62: #{tpu_custom_call.1} parent=5 // pred_check_branch
      %1323 = sbr.rel (%p1321) target = $region64
    $region63: #{tpu_custom_call.1} parent=5 // pred_region
      %s1324 = ssub.s32 %s15, 2
      // Predicated region
      $region65: #{tpu_custom_call.1} parent=63 // pred_check
        %p1325 = pneg %p271
      $region66: #{tpu_custom_call.1} parent=63 // pred_check_branch
        %1327 = sbr.rel (%p1325) target = $region68
      $region67: #{tpu_custom_call.1} parent=63 // pred_region
        %s1328 = smul.u32 8, %s27
        %p1329 = scmp.lt.s32.totalorder %s26, 1
        %s1330 = scalar_select %p1329, %s26, 1
        %p1331 = scmp.lt.s32.totalorder %s1328, 15
        %s1332 = scalar_select %p1331, %s1328, 15
        %s1333 = smul.addr %s1330, 16
        %s1334 = sadd.s32 %s1332, %s1333
        %s1335 = smul.addr %s1334, 8
        %s1336 = scalar_lea.vmem %s9, %s1335
      $region68: #{tpu_custom_call.1} parent=63 // pred_fallthru
        _
    $region64: #{tpu_custom_call.1} parent=5 // pred_fallthru
      _
  $region6: #{tpu_custom_call.1} parent=0 // loop_footer
    %s19 = sadd.s32 1, %s15
  $region7: #{tpu_custom_call.1} parent=0 // loop_footer_branch
    %14 = sbr.rel target = $region3
  $region8: #{tpu_custom_call.1} parent=0 // loop_exit
    _

</llo_original>
